<compile_context>
chip_gen: v7x
topology: tpu7x:2x2x1
jax: 0.10.0
libtpu: 0.0.40
codegen_flags: <defaults>
</compile_context>

<pallas_src>
import math

import jax
import jax.numpy as jnp
from jax.experimental import pallas as pl
from jax.experimental.pallas import tpu as pltpu

NEG_SLOPE = 0.1  # Python literal -> jaxpr constant, never a captured tracer.


# ----------------------------------------------------------------------------
# Small helpers
# ----------------------------------------------------------------------------
def _round_up(a, b):
    return ((a + b - 1) // b) * b


def _pick_s_tiling(s_prime):
    """Pick (TS, SP): lane tile (multiple of 128) and padded flat-S extent.

    Prefer >=2 S tiles (pipelining + megacore split on S), then minimal lane
    padding waste on the dominant weight array, then larger tiles (amortise the
    ~0.35us/step pipeline overhead).  For big OH*OW this lands on 512-1024.
    """
    best = None
    for ts in (1024, 512, 256, 128):
        sp = _round_up(s_prime, ts)
        ntiles = sp // ts
        key = (0 if ntiles >= 2 else 1, sp - s_prime, -ts)
        if best is None or key < best[0]:
            best = (key, ts, sp)
    return best[1], best[2]


def _pick_oc_tile(oc, r, ts, itemsize):
    """TOC on the output's sublane axis must be a multiple of 8 or == OC."""
    if oc % 8 != 0:
        return oc
    budget = 4 << 20  # per-buffer weight-block budget (well under v7x VMEM)
    toc = oc
    while toc % 16 == 0 and toc * r * ts * itemsize > budget:
        toc //= 2
    return toc


# ----------------------------------------------------------------------------
# Kernel
# ----------------------------------------------------------------------------
def _make_kernel(offsets, n_in_ch, dw, with_bias):
    """offsets: static per-k2 lane shifts (ki*Wp + kj) into the flat slab."""

    def body(x_ref, w_ref, b_ref, o_ref):
        n, toc, ts = o_ref.shape
        acc = jnp.zeros((n, toc, ts), jnp.float32)       # f32 accumulator
        x = x_ref[...]                                   # (N, C, TX) halo slab
        for k2, off in enumerate(offsets):               # K^2 static shifts
            if dw == 1:
                x_k = x[:, :, off:off + ts]
            else:
                # TODO(synk): lane-strided (stride>1) slice path is functional
                # in principle but untuned/untested on hardware here.
                x_k = x[:, :, off:off + ts * dw:dw]
            x_k = x_k.astype(jnp.float32)                # no-op for f32 input
            for c in range(n_in_ch):                     # chunked FMA into acc
                w_rc = w_ref[:, k2 * n_in_ch + c, :].astype(jnp.float32)
                acc = acc + x_k[:, c, :][:, None, :] * w_rc[None, :, :]
        if b_ref is not None:
            acc = acc + b_ref[:, 0, :][None, :, :]       # bias kept f32
        acc = jnp.where(acc >= 0.0, acc, acc * NEG_SLOPE)
        o_ref[...] = acc.astype(o_ref.dtype)             # one dense store

    if with_bias:
        def kernel(x_ref, w_ref, b_ref, o_ref):
            body(x_ref, w_ref, b_ref, o_ref)
    else:
        def kernel(x_ref, w_ref, o_ref):
            body(x_ref, w_ref, None, o_ref)
    return kernel


# ----------------------------------------------------------------------------
# One-time parameter preparation (feedback #1: do NOT run this per call)
# ----------------------------------------------------------------------------
def prepare_lc2d_params(weight, bias, kernel_size, stride, padding, input_hw):
    """Re-layout torch-style params into the kernel's flat s'-domain layout.

    weight: (1, OC, C, OH, OW, K*K);  bias: (1, OC, OH, OW) or None.
    Returns dict with prepared arrays + static geometry.  Call once.
    """
    kh, kw = kernel_size
    dh, dw = stride
    H, W = input_hw
    Hp, Wp = H + 2 * padding, W + 2 * padding
    OC, C, OH, OW, K2 = (weight.shape[1], weight.shape[2], weight.shape[3],
                         weight.shape[4], weight.shape[5])
    assert K2 == kh * kw
    assert OH == (Hp - kh) // dh + 1 and OW == (Wp - kw) // dw + 1
    assert (dh * Wp) % dw == 0, "row pitch must be an integer number of lanes"
    Wq = (dh * Wp) // dw                       # output-row pitch in lanes
    assert Wq >= OW
    s_prime = OH * Wq                          # flat (row-strided) output domain
    TS, SP = _pick_s_tiling(s_prime)

    # (1,OC,C,OH,OW,K2) -> (OC, K2*C, SP) with r = k2*C + c  (k2-major).
    w = jnp.transpose(weight[0], (0, 4, 1, 2, 3))               # (OC,K2,C,OH,OW)
    w = jnp.pad(w, ((0, 0), (0, 0), (0, 0), (0, 0), (0, Wq - OW)))
    w = w.reshape(OC, K2 * C, OH * Wq).astype(jnp.float32)
    w = jnp.pad(w, ((0, 0), (0, 0), (0, SP - s_prime)))

    b = None
    if bias is not None:
        bb = jnp.pad(bias[0].astype(jnp.float32),
                     ((0, 0), (0, 0), (0, Wq - OW)))             # (OC,OH,Wq)
        bb = bb.reshape(OC, 1, OH * Wq)
        b = jnp.pad(bb, ((0, 0), (0, 0), (0, SP - s_prime)))

    geom = dict(kh=kh, kw=kw, dh=dh, dw=dw, pad=padding, Hp=Hp, Wp=Wp,
                OH=OH, OW=OW, Wq=Wq, s_prime=s_prime, TS=TS, SP=SP,
                C=C, OC=OC, K2=K2)
    return {"w": w, "b": b, "geom": geom}


# ----------------------------------------------------------------------------
# Forward pass
# ----------------------------------------------------------------------------
def locally_connected_2d(x, params):
    g = params["geom"]
    w, b = params["w"], params["b"]
    N, C, H, W = x.shape
    assert C == g["C"] and H + 2 * g["pad"] == g["Hp"] and W + 2 * g["pad"] == g["Wp"]
    OC, SP, TS = g["OC"], g["SP"], g["TS"]
    Wp, Wq, OH, OW = g["Wp"], g["Wq"], g["OH"], g["OW"]
    kh, kw, dh, dw = g["kh"], g["kw"], g["dh"], g["dw"]
    R = g["K2"] * C
    n_s = SP // TS
    maxoff = (kh - 1) * Wp + (kw - 1)
    TX = _round_up(TS * dw + maxoff, 128)      # per-tile slab: tile + window halo

    # Pad + flatten the input once, then cut per-S-tile halo'd slabs.  This is
    # the only per-call relayout and it touches the small activation only.
    xp = jnp.pad(x, ((0, 0), (0, 0), (g["pad"],) * 2, (g["pad"],) * 2))
    xflat = xp.reshape(N, C, g["Hp"] * Wp)
    need = (n_s - 1) * TS * dw + TX
    if need > xflat.shape[-1]:
        xflat = jnp.pad(xflat, ((0, 0), (0, 0), (0, need - xflat.shape[-1])))
    x_halo = jnp.stack(
        [xflat[:, :, i * TS * dw: i * TS * dw + TX] for i in range(n_s)], axis=0)
    # x_halo: (n_s, N, C, TX)

    toc = _pick_oc_tile(OC, R, TS, 4)
    n_oc = OC // toc
    offsets = tuple(ki * Wp + kj for ki in range(kh) for kj in range(kw))
    kernel = _make_kernel(offsets, C, dw, with_bias=(b is not None))

    in_specs = [
        # input slab for this S tile (leading dim squeezed); re-used across the
        # inner OC axis (same block index -> not re-DMA'd).
        pl.BlockSpec((None, N, C, TX), lambda s, o: (s, 0, 0, 0)),
        # weights for this (OC tile, S tile); disjoint per grid step.
        pl.BlockSpec((toc, R, TS), lambda s, o: (o, 0, s)),
    ]
    args = [x_halo, w]
    if b is not None:
        in_specs.append(pl.BlockSpec((toc, 1, TS), lambda s, o: (o, 0, s)))
        args.append(b)

    # Explicit VMEM budget (feedback #5): blocks are double-buffered by the
    # pipeline; keep well under v7x's 64 MiB (this is ~hundreds of KiB here).
    per_step = (N * C * TX + toc * R * TS + N * toc * TS
                + (toc * TS if b is not None else 0)) * 4
    vmem_limit = int(min(64 * 1024 * 1024, max(8 * 1024 * 1024, 4 * per_step)))

    flops = 2 * N * OC * R * OH * OW
    bytes_accessed = int(x_halo.size * x_halo.dtype.itemsize + w.size * 4
                         + N * OC * SP * x.dtype.itemsize
                         + (b.size * 4 if b is not None else 0))

    out = pl.pallas_call(
        kernel,
        out_shape=jax.ShapeDtypeStruct((N, OC, SP), x.dtype),
        grid_spec=pltpu.PrefetchScalarGridSpec(
            num_scalar_prefetch=0,
            grid=(n_s, n_oc),                       # S first -> megacore on S
            in_specs=in_specs,
            out_specs=pl.BlockSpec((N, toc, TS), lambda s, o: (0, o, s)),
        ),
        compiler_params=pltpu.CompilerParams(
            dimension_semantics=("parallel", "arbitrary"),
            vmem_limit_bytes=vmem_limit),
        cost_estimate=pl.CostEstimate(flops=flops, transcendentals=0,
                                      bytes_accessed=bytes_accessed),
    )(*args)

    # (N, OC, SP) -> (N, OC, OH, OW): drop lane padding + per-row pitch slack.
    out = out[:, :, :OH * Wq].reshape(N, OC, OH, Wq)[:, :, :, :OW]
    return out


# ----------------------------------------------------------------------------
# Pure-JAX reference (mirror of the PyTorch forward) for verification
# ----------------------------------------------------------------------------
def _reference_forward(x, weight, bias, kernel_size, stride, padding):
    kh, kw = kernel_size
    dh, dw = stride
    xp = jnp.pad(x, ((0, 0), (0, 0), (padding, padding), (padding, padding)))
    N, C, H, W = xp.shape
    oh = (H - kh) // dh + 1
    ow = (W - kw) // dw + 1
    cols = []
    for ki in range(kh):
        for kj in range(kw):
            cols.append(xp[:, :, ki:ki + dh * oh:dh, kj:kj + dw * ow:dw])
    patches = jnp.stack(cols, axis=-1)                    # (N, C, OH, OW, K2)
    out = jnp.sum(patches[:, None] * weight, axis=(2, -1))
    if bias is not None:
        out = out + bias
    return jnp.where(out >= 0, out, NEG_SLOPE * out)


if __name__ == "__main__":
    # Module hyperparameters (small, consistent with the forward pass).
    in_channels, out_channels = 4, 8
    output_size, kernel_size, stride, padding = 16, 3, 1, 1
    N, H, W = 2, 16, 16

    key = jax.random.PRNGKey(0)
    kx, kwgt, kb = jax.random.split(key, 3)

    x = jax.random.normal(kx, (N, in_channels, H, W), dtype=jnp.float32)

    # Deterministic parameter init mirroring the module's __init__.
    K2 = kernel_size * kernel_size
    scale = math.sqrt(2.0 / (kernel_size * kernel_size * in_channels))
    w00 = (2.0 * jax.random.uniform(
        kwgt, (1, out_channels, in_channels, K2), dtype=jnp.float32) - 1.0) * scale
    weight = jnp.zeros(
        (1, out_channels, in_channels, output_size, output_size, K2),
        dtype=jnp.float32)
    weight = weight.at[:, :, :, 0, 0, :].set(w00)

    ks = (kernel_size, kernel_size)
    st = (stride, stride)

    # --- bias=False path (module default) -----------------------------------
    params = prepare_lc2d_params(weight, None, ks, st, padding, (H, W))  # once
    fwd = jax.jit(lambda xx: locally_connected_2d(xx, params))
    out = jax.block_until_ready(fwd(x))
    ref = _reference_forward(x, weight, None, ks, st, padding)
    assert out.shape == (N, out_channels, output_size, output_size), out.shape
    assert jnp.allclose(out, ref, atol=1e-5, rtol=1e-5), "mismatch (no bias)"

    # --- bias=True path ------------------------------------------------------
    bias = 0.1 * jax.random.normal(
        kb, (1, out_channels, output_size, output_size), dtype=jnp.float32)
    params_b = prepare_lc2d_params(weight, bias, ks, st, padding, (H, W))
    fwd_b = jax.jit(lambda xx: locally_connected_2d(xx, params_b))
    out_b = jax.block_until_ready(fwd_b(x))
    ref_b = _reference_forward(x, weight, bias, ks, st, padding)
    assert jnp.allclose(out_b, ref_b, atol=1e-5, rtol=1e-5), "mismatch (bias)"

    print("KERNEL_OK")
</pallas_src>

<mosaic_0001>
module attributes {stable_mosaic.version = 11 : i64} {
  func.func @kernel(%arg0: i32, %arg1: i32, %arg2: memref<1x2x4x256xf32, #tpu.memory_space<vmem>>, %arg3: memref<8x36x128xf32, #tpu.memory_space<vmem>>, %arg4: memref<2x8x128xf32, #tpu.memory_space<vmem>>) attributes {dimension_semantics = [#tpu.dimension_semantics<parallel>, #tpu.dimension_semantics<arbitrary>], iteration_bounds = array<i64: 3, 1>, scalar_prefetch = 0 : i64, scratch_operands = 0 : i64, tpu.core_type = #tpu.core_type<tc>, window_params = [{transform_indices = @transform_0, window_bounds = array<i64: 1, 2, 4, 256>}, {transform_indices = @transform_1, window_bounds = array<i64: 8, 36, 128>}, {transform_indices = @transform_2, window_bounds = array<i64: 2, 8, 128>}]} {
    %cst = arith.constant 0.000000e+00 : f32
    %0 = vector.broadcast %cst : f32 to vector<2x8x128xf32>
    %c0 = arith.constant 0 : index
    %c0_0 = arith.constant 0 : index
    %c0_1 = arith.constant 0 : index
    %c0_2 = arith.constant 0 : index
    %1 = vector.load %arg2[%c0, %c0_0, %c0_1, %c0_2] : memref<1x2x4x256xf32, #tpu.memory_space<vmem>>, vector<1x2x4x256xf32>
    %2 = vector.shape_cast %1 : vector<1x2x4x256xf32> to vector<2x4x256xf32>
    %3 = vector.extract_strided_slice %2 {offsets = [0, 0, 0], sizes = [2, 4, 128], strides = [1, 1, 1]} : vector<2x4x256xf32> to vector<2x4x128xf32>
    %c0_3 = arith.constant 0 : index
    %c0_4 = arith.constant 0 : index
    %c0_5 = arith.constant 0 : index
    %4 = vector.load %arg3[%c0_3, %c0_4, %c0_5] : memref<8x36x128xf32, #tpu.memory_space<vmem>>, vector<8x1x128xf32>
    %5 = vector.shape_cast %4 : vector<8x1x128xf32> to vector<8x128xf32>
    %6 = vector.extract_strided_slice %3 {offsets = [0, 0, 0], sizes = [2, 1, 128], strides = [1, 1, 1]} : vector<2x4x128xf32> to vector<2x1x128xf32>
    %7 = vector.shape_cast %6 : vector<2x1x128xf32> to vector<2x128xf32>
    %8 = vector.shape_cast %7 : vector<2x128xf32> to vector<2x1x128xf32>
    %9 = vector.shape_cast %5 : vector<8x128xf32> to vector<1x8x128xf32>
    %10 = vector.broadcast %8 : vector<2x1x128xf32> to vector<2x8x128xf32>
    %11 = vector.broadcast %9 : vector<1x8x128xf32> to vector<2x8x128xf32>
    %12 = arith.mulf %10, %11 : vector<2x8x128xf32>
    %13 = arith.addf %0, %12 : vector<2x8x128xf32>
    %c0_6 = arith.constant 0 : index
    %c1 = arith.constant 1 : index
    %c0_7 = arith.constant 0 : index
    %14 = vector.load %arg3[%c0_6, %c1, %c0_7] : memref<8x36x128xf32, #tpu.memory_space<vmem>>, vector<8x1x128xf32>
    %15 = vector.shape_cast %14 : vector<8x1x128xf32> to vector<8x128xf32>
    %16 = vector.extract_strided_slice %3 {offsets = [0, 1, 0], sizes = [2, 1, 128], strides = [1, 1, 1]} : vector<2x4x128xf32> to vector<2x1x128xf32>
    %17 = vector.shape_cast %16 : vector<2x1x128xf32> to vector<2x128xf32>
    %18 = vector.shape_cast %17 : vector<2x128xf32> to vector<2x1x128xf32>
    %19 = vector.shape_cast %15 : vector<8x128xf32> to vector<1x8x128xf32>
    %20 = vector.broadcast %18 : vector<2x1x128xf32> to vector<2x8x128xf32>
    %21 = vector.broadcast %19 : vector<1x8x128xf32> to vector<2x8x128xf32>
    %22 = arith.mulf %20, %21 : vector<2x8x128xf32>
    %23 = arith.addf %13, %22 : vector<2x8x128xf32>
    %c0_8 = arith.constant 0 : index
    %c2 = arith.constant 2 : index
    %c0_9 = arith.constant 0 : index
    %24 = vector.load %arg3[%c0_8, %c2, %c0_9] : memref<8x36x128xf32, #tpu.memory_space<vmem>>, vector<8x1x128xf32>
    %25 = vector.shape_cast %24 : vector<8x1x128xf32> to vector<8x128xf32>
    %26 = vector.extract_strided_slice %3 {offsets = [0, 2, 0], sizes = [2, 1, 128], strides = [1, 1, 1]} : vector<2x4x128xf32> to vector<2x1x128xf32>
    %27 = vector.shape_cast %26 : vector<2x1x128xf32> to vector<2x128xf32>
    %28 = vector.shape_cast %27 : vector<2x128xf32> to vector<2x1x128xf32>
    %29 = vector.shape_cast %25 : vector<8x128xf32> to vector<1x8x128xf32>
    %30 = vector.broadcast %28 : vector<2x1x128xf32> to vector<2x8x128xf32>
    %31 = vector.broadcast %29 : vector<1x8x128xf32> to vector<2x8x128xf32>
    %32 = arith.mulf %30, %31 : vector<2x8x128xf32>
    %33 = arith.addf %23, %32 : vector<2x8x128xf32>
    %c0_10 = arith.constant 0 : index
    %c3 = arith.constant 3 : index
    %c0_11 = arith.constant 0 : index
    %34 = vector.load %arg3[%c0_10, %c3, %c0_11] : memref<8x36x128xf32, #tpu.memory_space<vmem>>, vector<8x1x128xf32>
    %35 = vector.shape_cast %34 : vector<8x1x128xf32> to vector<8x128xf32>
    %36 = vector.extract_strided_slice %3 {offsets = [0, 3, 0], sizes = [2, 1, 128], strides = [1, 1, 1]} : vector<2x4x128xf32> to vector<2x1x128xf32>
    %37 = vector.shape_cast %36 : vector<2x1x128xf32> to vector<2x128xf32>
    %38 = vector.shape_cast %37 : vector<2x128xf32> to vector<2x1x128xf32>
    %39 = vector.shape_cast %35 : vector<8x128xf32> to vector<1x8x128xf32>
    %40 = vector.broadcast %38 : vector<2x1x128xf32> to vector<2x8x128xf32>
    %41 = vector.broadcast %39 : vector<1x8x128xf32> to vector<2x8x128xf32>
    %42 = arith.mulf %40, %41 : vector<2x8x128xf32>
    %43 = arith.addf %33, %42 : vector<2x8x128xf32>
    %44 = vector.extract_strided_slice %2 {offsets = [0, 0, 1], sizes = [2, 4, 128], strides = [1, 1, 1]} : vector<2x4x256xf32> to vector<2x4x128xf32>
    %c0_12 = arith.constant 0 : index
    %c4 = arith.constant 4 : index
    %c0_13 = arith.constant 0 : index
    %45 = vector.load %arg3[%c0_12, %c4, %c0_13] : memref<8x36x128xf32, #tpu.memory_space<vmem>>, vector<8x1x128xf32>
    %46 = vector.shape_cast %45 : vector<8x1x128xf32> to vector<8x128xf32>
    %47 = vector.extract_strided_slice %44 {offsets = [0, 0, 0], sizes = [2, 1, 128], strides = [1, 1, 1]} : vector<2x4x128xf32> to vector<2x1x128xf32>
    %48 = vector.shape_cast %47 : vector<2x1x128xf32> to vector<2x128xf32>
    %49 = vector.shape_cast %48 : vector<2x128xf32> to vector<2x1x128xf32>
    %50 = vector.shape_cast %46 : vector<8x128xf32> to vector<1x8x128xf32>
    %51 = vector.broadcast %49 : vector<2x1x128xf32> to vector<2x8x128xf32>
    %52 = vector.broadcast %50 : vector<1x8x128xf32> to vector<2x8x128xf32>
    %53 = arith.mulf %51, %52 : vector<2x8x128xf32>
    %54 = arith.addf %43, %53 : vector<2x8x128xf32>
    %c0_14 = arith.constant 0 : index
    %c5 = arith.constant 5 : index
    %c0_15 = arith.constant 0 : index
    %55 = vector.load %arg3[%c0_14, %c5, %c0_15] : memref<8x36x128xf32, #tpu.memory_space<vmem>>, vector<8x1x128xf32>
    %56 = vector.shape_cast %55 : vector<8x1x128xf32> to vector<8x128xf32>
    %57 = vector.extract_strided_slice %44 {offsets = [0, 1, 0], sizes = [2, 1, 128], strides = [1, 1, 1]} : vector<2x4x128xf32> to vector<2x1x128xf32>
    %58 = vector.shape_cast %57 : vector<2x1x128xf32> to vector<2x128xf32>
    %59 = vector.shape_cast %58 : vector<2x128xf32> to vector<2x1x128xf32>
    %60 = vector.shape_cast %56 : vector<8x128xf32> to vector<1x8x128xf32>
    %61 = vector.broadcast %59 : vector<2x1x128xf32> to vector<2x8x128xf32>
    %62 = vector.broadcast %60 : vector<1x8x128xf32> to vector<2x8x128xf32>
    %63 = arith.mulf %61, %62 : vector<2x8x128xf32>
    %64 = arith.addf %54, %63 : vector<2x8x128xf32>
    %c0_16 = arith.constant 0 : index
    %c6 = arith.constant 6 : index
    %c0_17 = arith.constant 0 : index
    %65 = vector.load %arg3[%c0_16, %c6, %c0_17] : memref<8x36x128xf32, #tpu.memory_space<vmem>>, vector<8x1x128xf32>
    %66 = vector.shape_cast %65 : vector<8x1x128xf32> to vector<8x128xf32>
    %67 = vector.extract_strided_slice %44 {offsets = [0, 2, 0], sizes = [2, 1, 128], strides = [1, 1, 1]} : vector<2x4x128xf32> to vector<2x1x128xf32>
    %68 = vector.shape_cast %67 : vector<2x1x128xf32> to vector<2x128xf32>
    %69 = vector.shape_cast %68 : vector<2x128xf32> to vector<2x1x128xf32>
    %70 = vector.shape_cast %66 : vector<8x128xf32> to vector<1x8x128xf32>
    %71 = vector.broadcast %69 : vector<2x1x128xf32> to vector<2x8x128xf32>
    %72 = vector.broadcast %70 : vector<1x8x128xf32> to vector<2x8x128xf32>
    %73 = arith.mulf %71, %72 : vector<2x8x128xf32>
    %74 = arith.addf %64, %73 : vector<2x8x128xf32>
    %c0_18 = arith.constant 0 : index
    %c7 = arith.constant 7 : index
    %c0_19 = arith.constant 0 : index
    %75 = vector.load %arg3[%c0_18, %c7, %c0_19] : memref<8x36x128xf32, #tpu.memory_space<vmem>>, vector<8x1x128xf32>
    %76 = vector.shape_cast %75 : vector<8x1x128xf32> to vector<8x128xf32>
    %77 = vector.extract_strided_slice %44 {offsets = [0, 3, 0], sizes = [2, 1, 128], strides = [1, 1, 1]} : vector<2x4x128xf32> to vector<2x1x128xf32>
    %78 = vector.shape_cast %77 : vector<2x1x128xf32> to vector<2x128xf32>
    %79 = vector.shape_cast %78 : vector<2x128xf32> to vector<2x1x128xf32>
    %80 = vector.shape_cast %76 : vector<8x128xf32> to vector<1x8x128xf32>
    %81 = vector.broadcast %79 : vector<2x1x128xf32> to vector<2x8x128xf32>
    %82 = vector.broadcast %80 : vector<1x8x128xf32> to vector<2x8x128xf32>
    %83 = arith.mulf %81, %82 : vector<2x8x128xf32>
    %84 = arith.addf %74, %83 : vector<2x8x128xf32>
    %85 = vector.extract_strided_slice %2 {offsets = [0, 0, 2], sizes = [2, 4, 128], strides = [1, 1, 1]} : vector<2x4x256xf32> to vector<2x4x128xf32>
    %c0_20 = arith.constant 0 : index
    %c8 = arith.constant 8 : index
    %c0_21 = arith.constant 0 : index
    %86 = vector.load %arg3[%c0_20, %c8, %c0_21] : memref<8x36x128xf32, #tpu.memory_space<vmem>>, vector<8x1x128xf32>
    %87 = vector.shape_cast %86 : vector<8x1x128xf32> to vector<8x128xf32>
    %88 = vector.extract_strided_slice %85 {offsets = [0, 0, 0], sizes = [2, 1, 128], strides = [1, 1, 1]} : vector<2x4x128xf32> to vector<2x1x128xf32>
    %89 = vector.shape_cast %88 : vector<2x1x128xf32> to vector<2x128xf32>
    %90 = vector.shape_cast %89 : vector<2x128xf32> to vector<2x1x128xf32>
    %91 = vector.shape_cast %87 : vector<8x128xf32> to vector<1x8x128xf32>
    %92 = vector.broadcast %90 : vector<2x1x128xf32> to vector<2x8x128xf32>
    %93 = vector.broadcast %91 : vector<1x8x128xf32> to vector<2x8x128xf32>
    %94 = arith.mulf %92, %93 : vector<2x8x128xf32>
    %95 = arith.addf %84, %94 : vector<2x8x128xf32>
    %c0_22 = arith.constant 0 : index
    %c9 = arith.constant 9 : index
    %c0_23 = arith.constant 0 : index
    %96 = vector.load %arg3[%c0_22, %c9, %c0_23] : memref<8x36x128xf32, #tpu.memory_space<vmem>>, vector<8x1x128xf32>
    %97 = vector.shape_cast %96 : vector<8x1x128xf32> to vector<8x128xf32>
    %98 = vector.extract_strided_slice %85 {offsets = [0, 1, 0], sizes = [2, 1, 128], strides = [1, 1, 1]} : vector<2x4x128xf32> to vector<2x1x128xf32>
    %99 = vector.shape_cast %98 : vector<2x1x128xf32> to vector<2x128xf32>
    %100 = vector.shape_cast %99 : vector<2x128xf32> to vector<2x1x128xf32>
    %101 = vector.shape_cast %97 : vector<8x128xf32> to vector<1x8x128xf32>
    %102 = vector.broadcast %100 : vector<2x1x128xf32> to vector<2x8x128xf32>
    %103 = vector.broadcast %101 : vector<1x8x128xf32> to vector<2x8x128xf32>
    %104 = arith.mulf %102, %103 : vector<2x8x128xf32>
    %105 = arith.addf %95, %104 : vector<2x8x128xf32>
    %c0_24 = arith.constant 0 : index
    %c10 = arith.constant 10 : index
    %c0_25 = arith.constant 0 : index
    %106 = vector.load %arg3[%c0_24, %c10, %c0_25] : memref<8x36x128xf32, #tpu.memory_space<vmem>>, vector<8x1x128xf32>
    %107 = vector.shape_cast %106 : vector<8x1x128xf32> to vector<8x128xf32>
    %108 = vector.extract_strided_slice %85 {offsets = [0, 2, 0], sizes = [2, 1, 128], strides = [1, 1, 1]} : vector<2x4x128xf32> to vector<2x1x128xf32>
    %109 = vector.shape_cast %108 : vector<2x1x128xf32> to vector<2x128xf32>
    %110 = vector.shape_cast %109 : vector<2x128xf32> to vector<2x1x128xf32>
    %111 = vector.shape_cast %107 : vector<8x128xf32> to vector<1x8x128xf32>
    %112 = vector.broadcast %110 : vector<2x1x128xf32> to vector<2x8x128xf32>
    %113 = vector.broadcast %111 : vector<1x8x128xf32> to vector<2x8x128xf32>
    %114 = arith.mulf %112, %113 : vector<2x8x128xf32>
    %115 = arith.addf %105, %114 : vector<2x8x128xf32>
    %c0_26 = arith.constant 0 : index
    %c11 = arith.constant 11 : index
    %c0_27 = arith.constant 0 : index
    %116 = vector.load %arg3[%c0_26, %c11, %c0_27] : memref<8x36x128xf32, #tpu.memory_space<vmem>>, vector<8x1x128xf32>
    %117 = vector.shape_cast %116 : vector<8x1x128xf32> to vector<8x128xf32>
    %118 = vector.extract_strided_slice %85 {offsets = [0, 3, 0], sizes = [2, 1, 128], strides = [1, 1, 1]} : vector<2x4x128xf32> to vector<2x1x128xf32>
    %119 = vector.shape_cast %118 : vector<2x1x128xf32> to vector<2x128xf32>
    %120 = vector.shape_cast %119 : vector<2x128xf32> to vector<2x1x128xf32>
    %121 = vector.shape_cast %117 : vector<8x128xf32> to vector<1x8x128xf32>
    %122 = vector.broadcast %120 : vector<2x1x128xf32> to vector<2x8x128xf32>
    %123 = vector.broadcast %121 : vector<1x8x128xf32> to vector<2x8x128xf32>
    %124 = arith.mulf %122, %123 : vector<2x8x128xf32>
    %125 = arith.addf %115, %124 : vector<2x8x128xf32>
    %126 = vector.extract_strided_slice %2 {offsets = [0, 0, 18], sizes = [2, 4, 128], strides = [1, 1, 1]} : vector<2x4x256xf32> to vector<2x4x128xf32>
    %c0_28 = arith.constant 0 : index
    %c12 = arith.constant 12 : index
    %c0_29 = arith.constant 0 : index
    %127 = vector.load %arg3[%c0_28, %c12, %c0_29] : memref<8x36x128xf32, #tpu.memory_space<vmem>>, vector<8x1x128xf32>
    %128 = vector.shape_cast %127 : vector<8x1x128xf32> to vector<8x128xf32>
    %129 = vector.extract_strided_slice %126 {offsets = [0, 0, 0], sizes = [2, 1, 128], strides = [1, 1, 1]} : vector<2x4x128xf32> to vector<2x1x128xf32>
    %130 = vector.shape_cast %129 : vector<2x1x128xf32> to vector<2x128xf32>
    %131 = vector.shape_cast %130 : vector<2x128xf32> to vector<2x1x128xf32>
    %132 = vector.shape_cast %128 : vector<8x128xf32> to vector<1x8x128xf32>
    %133 = vector.broadcast %131 : vector<2x1x128xf32> to vector<2x8x128xf32>
    %134 = vector.broadcast %132 : vector<1x8x128xf32> to vector<2x8x128xf32>
    %135 = arith.mulf %133, %134 : vector<2x8x128xf32>
    %136 = arith.addf %125, %135 : vector<2x8x128xf32>
    %c0_30 = arith.constant 0 : index
    %c13 = arith.constant 13 : index
    %c0_31 = arith.constant 0 : index
    %137 = vector.load %arg3[%c0_30, %c13, %c0_31] : memref<8x36x128xf32, #tpu.memory_space<vmem>>, vector<8x1x128xf32>
    %138 = vector.shape_cast %137 : vector<8x1x128xf32> to vector<8x128xf32>
    %139 = vector.extract_strided_slice %126 {offsets = [0, 1, 0], sizes = [2, 1, 128], strides = [1, 1, 1]} : vector<2x4x128xf32> to vector<2x1x128xf32>
    %140 = vector.shape_cast %139 : vector<2x1x128xf32> to vector<2x128xf32>
    %141 = vector.shape_cast %140 : vector<2x128xf32> to vector<2x1x128xf32>
    %142 = vector.shape_cast %138 : vector<8x128xf32> to vector<1x8x128xf32>
    %143 = vector.broadcast %141 : vector<2x1x128xf32> to vector<2x8x128xf32>
    %144 = vector.broadcast %142 : vector<1x8x128xf32> to vector<2x8x128xf32>
    %145 = arith.mulf %143, %144 : vector<2x8x128xf32>
    %146 = arith.addf %136, %145 : vector<2x8x128xf32>
    %c0_32 = arith.constant 0 : index
    %c14 = arith.constant 14 : index
    %c0_33 = arith.constant 0 : index
    %147 = vector.load %arg3[%c0_32, %c14, %c0_33] : memref<8x36x128xf32, #tpu.memory_space<vmem>>, vector<8x1x128xf32>
    %148 = vector.shape_cast %147 : vector<8x1x128xf32> to vector<8x128xf32>
    %149 = vector.extract_strided_slice %126 {offsets = [0, 2, 0], sizes = [2, 1, 128], strides = [1, 1, 1]} : vector<2x4x128xf32> to vector<2x1x128xf32>
    %150 = vector.shape_cast %149 : vector<2x1x128xf32> to vector<2x128xf32>
    %151 = vector.shape_cast %150 : vector<2x128xf32> to vector<2x1x128xf32>
    %152 = vector.shape_cast %148 : vector<8x128xf32> to vector<1x8x128xf32>
    %153 = vector.broadcast %151 : vector<2x1x128xf32> to vector<2x8x128xf32>
    %154 = vector.broadcast %152 : vector<1x8x128xf32> to vector<2x8x128xf32>
    %155 = arith.mulf %153, %154 : vector<2x8x128xf32>
    %156 = arith.addf %146, %155 : vector<2x8x128xf32>
    %c0_34 = arith.constant 0 : index
    %c15 = arith.constant 15 : index
    %c0_35 = arith.constant 0 : index
    %157 = vector.load %arg3[%c0_34, %c15, %c0_35] : memref<8x36x128xf32, #tpu.memory_space<vmem>>, vector<8x1x128xf32>
    %158 = vector.shape_cast %157 : vector<8x1x128xf32> to vector<8x128xf32>
    %159 = vector.extract_strided_slice %126 {offsets = [0, 3, 0], sizes = [2, 1, 128], strides = [1, 1, 1]} : vector<2x4x128xf32> to vector<2x1x128xf32>
    %160 = vector.shape_cast %159 : vector<2x1x128xf32> to vector<2x128xf32>
    %161 = vector.shape_cast %160 : vector<2x128xf32> to vector<2x1x128xf32>
    %162 = vector.shape_cast %158 : vector<8x128xf32> to vector<1x8x128xf32>
    %163 = vector.broadcast %161 : vector<2x1x128xf32> to vector<2x8x128xf32>
    %164 = vector.broadcast %162 : vector<1x8x128xf32> to vector<2x8x128xf32>
    %165 = arith.mulf %163, %164 : vector<2x8x128xf32>
    %166 = arith.addf %156, %165 : vector<2x8x128xf32>
    %167 = vector.extract_strided_slice %2 {offsets = [0, 0, 19], sizes = [2, 4, 128], strides = [1, 1, 1]} : vector<2x4x256xf32> to vector<2x4x128xf32>
    %c0_36 = arith.constant 0 : index
    %c16 = arith.constant 16 : index
    %c0_37 = arith.constant 0 : index
    %168 = vector.load %arg3[%c0_36, %c16, %c0_37] : memref<8x36x128xf32, #tpu.memory_space<vmem>>, vector<8x1x128xf32>
    %169 = vector.shape_cast %168 : vector<8x1x128xf32> to vector<8x128xf32>
    %170 = vector.extract_strided_slice %167 {offsets = [0, 0, 0], sizes = [2, 1, 128], strides = [1, 1, 1]} : vector<2x4x128xf32> to vector<2x1x128xf32>
    %171 = vector.shape_cast %170 : vector<2x1x128xf32> to vector<2x128xf32>
    %172 = vector.shape_cast %171 : vector<2x128xf32> to vector<2x1x128xf32>
    %173 = vector.shape_cast %169 : vector<8x128xf32> to vector<1x8x128xf32>
    %174 = vector.broadcast %172 : vector<2x1x128xf32> to vector<2x8x128xf32>
    %175 = vector.broadcast %173 : vector<1x8x128xf32> to vector<2x8x128xf32>
    %176 = arith.mulf %174, %175 : vector<2x8x128xf32>
    %177 = arith.addf %166, %176 : vector<2x8x128xf32>
    %c0_38 = arith.constant 0 : index
    %c17 = arith.constant 17 : index
    %c0_39 = arith.constant 0 : index
    %178 = vector.load %arg3[%c0_38, %c17, %c0_39] : memref<8x36x128xf32, #tpu.memory_space<vmem>>, vector<8x1x128xf32>
    %179 = vector.shape_cast %178 : vector<8x1x128xf32> to vector<8x128xf32>
    %180 = vector.extract_strided_slice %167 {offsets = [0, 1, 0], sizes = [2, 1, 128], strides = [1, 1, 1]} : vector<2x4x128xf32> to vector<2x1x128xf32>
    %181 = vector.shape_cast %180 : vector<2x1x128xf32> to vector<2x128xf32>
    %182 = vector.shape_cast %181 : vector<2x128xf32> to vector<2x1x128xf32>
    %183 = vector.shape_cast %179 : vector<8x128xf32> to vector<1x8x128xf32>
    %184 = vector.broadcast %182 : vector<2x1x128xf32> to vector<2x8x128xf32>
    %185 = vector.broadcast %183 : vector<1x8x128xf32> to vector<2x8x128xf32>
    %186 = arith.mulf %184, %185 : vector<2x8x128xf32>
    %187 = arith.addf %177, %186 : vector<2x8x128xf32>
    %c0_40 = arith.constant 0 : index
    %c18 = arith.constant 18 : index
    %c0_41 = arith.constant 0 : index
    %188 = vector.load %arg3[%c0_40, %c18, %c0_41] : memref<8x36x128xf32, #tpu.memory_space<vmem>>, vector<8x1x128xf32>
    %189 = vector.shape_cast %188 : vector<8x1x128xf32> to vector<8x128xf32>
    %190 = vector.extract_strided_slice %167 {offsets = [0, 2, 0], sizes = [2, 1, 128], strides = [1, 1, 1]} : vector<2x4x128xf32> to vector<2x1x128xf32>
    %191 = vector.shape_cast %190 : vector<2x1x128xf32> to vector<2x128xf32>
    %192 = vector.shape_cast %191 : vector<2x128xf32> to vector<2x1x128xf32>
    %193 = vector.shape_cast %189 : vector<8x128xf32> to vector<1x8x128xf32>
    %194 = vector.broadcast %192 : vector<2x1x128xf32> to vector<2x8x128xf32>
    %195 = vector.broadcast %193 : vector<1x8x128xf32> to vector<2x8x128xf32>
    %196 = arith.mulf %194, %195 : vector<2x8x128xf32>
    %197 = arith.addf %187, %196 : vector<2x8x128xf32>
    %c0_42 = arith.constant 0 : index
    %c19 = arith.constant 19 : index
    %c0_43 = arith.constant 0 : index
    %198 = vector.load %arg3[%c0_42, %c19, %c0_43] : memref<8x36x128xf32, #tpu.memory_space<vmem>>, vector<8x1x128xf32>
    %199 = vector.shape_cast %198 : vector<8x1x128xf32> to vector<8x128xf32>
    %200 = vector.extract_strided_slice %167 {offsets = [0, 3, 0], sizes = [2, 1, 128], strides = [1, 1, 1]} : vector<2x4x128xf32> to vector<2x1x128xf32>
    %201 = vector.shape_cast %200 : vector<2x1x128xf32> to vector<2x128xf32>
    %202 = vector.shape_cast %201 : vector<2x128xf32> to vector<2x1x128xf32>
    %203 = vector.shape_cast %199 : vector<8x128xf32> to vector<1x8x128xf32>
    %204 = vector.broadcast %202 : vector<2x1x128xf32> to vector<2x8x128xf32>
    %205 = vector.broadcast %203 : vector<1x8x128xf32> to vector<2x8x128xf32>
    %206 = arith.mulf %204, %205 : vector<2x8x128xf32>
    %207 = arith.addf %197, %206 : vector<2x8x128xf32>
    %208 = vector.extract_strided_slice %2 {offsets = [0, 0, 20], sizes = [2, 4, 128], strides = [1, 1, 1]} : vector<2x4x256xf32> to vector<2x4x128xf32>
    %c0_44 = arith.constant 0 : index
    %c20 = arith.constant 20 : index
    %c0_45 = arith.constant 0 : index
    %209 = vector.load %arg3[%c0_44, %c20, %c0_45] : memref<8x36x128xf32, #tpu.memory_space<vmem>>, vector<8x1x128xf32>
    %210 = vector.shape_cast %209 : vector<8x1x128xf32> to vector<8x128xf32>
    %211 = vector.extract_strided_slice %208 {offsets = [0, 0, 0], sizes = [2, 1, 128], strides = [1, 1, 1]} : vector<2x4x128xf32> to vector<2x1x128xf32>
    %212 = vector.shape_cast %211 : vector<2x1x128xf32> to vector<2x128xf32>
    %213 = vector.shape_cast %212 : vector<2x128xf32> to vector<2x1x128xf32>
    %214 = vector.shape_cast %210 : vector<8x128xf32> to vector<1x8x128xf32>
    %215 = vector.broadcast %213 : vector<2x1x128xf32> to vector<2x8x128xf32>
    %216 = vector.broadcast %214 : vector<1x8x128xf32> to vector<2x8x128xf32>
    %217 = arith.mulf %215, %216 : vector<2x8x128xf32>
    %218 = arith.addf %207, %217 : vector<2x8x128xf32>
    %c0_46 = arith.constant 0 : index
    %c21 = arith.constant 21 : index
    %c0_47 = arith.constant 0 : index
    %219 = vector.load %arg3[%c0_46, %c21, %c0_47] : memref<8x36x128xf32, #tpu.memory_space<vmem>>, vector<8x1x128xf32>
    %220 = vector.shape_cast %219 : vector<8x1x128xf32> to vector<8x128xf32>
    %221 = vector.extract_strided_slice %208 {offsets = [0, 1, 0], sizes = [2, 1, 128], strides = [1, 1, 1]} : vector<2x4x128xf32> to vector<2x1x128xf32>
    %222 = vector.shape_cast %221 : vector<2x1x128xf32> to vector<2x128xf32>
    %223 = vector.shape_cast %222 : vector<2x128xf32> to vector<2x1x128xf32>
    %224 = vector.shape_cast %220 : vector<8x128xf32> to vector<1x8x128xf32>
    %225 = vector.broadcast %223 : vector<2x1x128xf32> to vector<2x8x128xf32>
    %226 = vector.broadcast %224 : vector<1x8x128xf32> to vector<2x8x128xf32>
    %227 = arith.mulf %225, %226 : vector<2x8x128xf32>
    %228 = arith.addf %218, %227 : vector<2x8x128xf32>
    %c0_48 = arith.constant 0 : index
    %c22 = arith.constant 22 : index
    %c0_49 = arith.constant 0 : index
    %229 = vector.load %arg3[%c0_48, %c22, %c0_49] : memref<8x36x128xf32, #tpu.memory_space<vmem>>, vector<8x1x128xf32>
    %230 = vector.shape_cast %229 : vector<8x1x128xf32> to vector<8x128xf32>
    %231 = vector.extract_strided_slice %208 {offsets = [0, 2, 0], sizes = [2, 1, 128], strides = [1, 1, 1]} : vector<2x4x128xf32> to vector<2x1x128xf32>
    %232 = vector.shape_cast %231 : vector<2x1x128xf32> to vector<2x128xf32>
    %233 = vector.shape_cast %232 : vector<2x128xf32> to vector<2x1x128xf32>
    %234 = vector.shape_cast %230 : vector<8x128xf32> to vector<1x8x128xf32>
    %235 = vector.broadcast %233 : vector<2x1x128xf32> to vector<2x8x128xf32>
    %236 = vector.broadcast %234 : vector<1x8x128xf32> to vector<2x8x128xf32>
    %237 = arith.mulf %235, %236 : vector<2x8x128xf32>
    %238 = arith.addf %228, %237 : vector<2x8x128xf32>
    %c0_50 = arith.constant 0 : index
    %c23 = arith.constant 23 : index
    %c0_51 = arith.constant 0 : index
    %239 = vector.load %arg3[%c0_50, %c23, %c0_51] : memref<8x36x128xf32, #tpu.memory_space<vmem>>, vector<8x1x128xf32>
    %240 = vector.shape_cast %239 : vector<8x1x128xf32> to vector<8x128xf32>
    %241 = vector.extract_strided_slice %208 {offsets = [0, 3, 0], sizes = [2, 1, 128], strides = [1, 1, 1]} : vector<2x4x128xf32> to vector<2x1x128xf32>
    %242 = vector.shape_cast %241 : vector<2x1x128xf32> to vector<2x128xf32>
    %243 = vector.shape_cast %242 : vector<2x128xf32> to vector<2x1x128xf32>
    %244 = vector.shape_cast %240 : vector<8x128xf32> to vector<1x8x128xf32>
    %245 = vector.broadcast %243 : vector<2x1x128xf32> to vector<2x8x128xf32>
    %246 = vector.broadcast %244 : vector<1x8x128xf32> to vector<2x8x128xf32>
    %247 = arith.mulf %245, %246 : vector<2x8x128xf32>
    %248 = arith.addf %238, %247 : vector<2x8x128xf32>
    %249 = vector.extract_strided_slice %2 {offsets = [0, 0, 36], sizes = [2, 4, 128], strides = [1, 1, 1]} : vector<2x4x256xf32> to vector<2x4x128xf32>
    %c0_52 = arith.constant 0 : index
    %c24 = arith.constant 24 : index
    %c0_53 = arith.constant 0 : index
    %250 = vector.load %arg3[%c0_52, %c24, %c0_53] : memref<8x36x128xf32, #tpu.memory_space<vmem>>, vector<8x1x128xf32>
    %251 = vector.shape_cast %250 : vector<8x1x128xf32> to vector<8x128xf32>
    %252 = vector.extract_strided_slice %249 {offsets = [0, 0, 0], sizes = [2, 1, 128], strides = [1, 1, 1]} : vector<2x4x128xf32> to vector<2x1x128xf32>
    %253 = vector.shape_cast %252 : vector<2x1x128xf32> to vector<2x128xf32>
    %254 = vector.shape_cast %253 : vector<2x128xf32> to vector<2x1x128xf32>
    %255 = vector.shape_cast %251 : vector<8x128xf32> to vector<1x8x128xf32>
    %256 = vector.broadcast %254 : vector<2x1x128xf32> to vector<2x8x128xf32>
    %257 = vector.broadcast %255 : vector<1x8x128xf32> to vector<2x8x128xf32>
    %258 = arith.mulf %256, %257 : vector<2x8x128xf32>
    %259 = arith.addf %248, %258 : vector<2x8x128xf32>
    %c0_54 = arith.constant 0 : index
    %c25 = arith.constant 25 : index
    %c0_55 = arith.constant 0 : index
    %260 = vector.load %arg3[%c0_54, %c25, %c0_55] : memref<8x36x128xf32, #tpu.memory_space<vmem>>, vector<8x1x128xf32>
    %261 = vector.shape_cast %260 : vector<8x1x128xf32> to vector<8x128xf32>
    %262 = vector.extract_strided_slice %249 {offsets = [0, 1, 0], sizes = [2, 1, 128], strides = [1, 1, 1]} : vector<2x4x128xf32> to vector<2x1x128xf32>
    %263 = vector.shape_cast %262 : vector<2x1x128xf32> to vector<2x128xf32>
    %264 = vector.shape_cast %263 : vector<2x128xf32> to vector<2x1x128xf32>
    %265 = vector.shape_cast %261 : vector<8x128xf32> to vector<1x8x128xf32>
    %266 = vector.broadcast %264 : vector<2x1x128xf32> to vector<2x8x128xf32>
    %267 = vector.broadcast %265 : vector<1x8x128xf32> to vector<2x8x128xf32>
    %268 = arith.mulf %266, %267 : vector<2x8x128xf32>
    %269 = arith.addf %259, %268 : vector<2x8x128xf32>
    %c0_56 = arith.constant 0 : index
    %c26 = arith.constant 26 : index
    %c0_57 = arith.constant 0 : index
    %270 = vector.load %arg3[%c0_56, %c26, %c0_57] : memref<8x36x128xf32, #tpu.memory_space<vmem>>, vector<8x1x128xf32>
    %271 = vector.shape_cast %270 : vector<8x1x128xf32> to vector<8x128xf32>
    %272 = vector.extract_strided_slice %249 {offsets = [0, 2, 0], sizes = [2, 1, 128], strides = [1, 1, 1]} : vector<2x4x128xf32> to vector<2x1x128xf32>
    %273 = vector.shape_cast %272 : vector<2x1x128xf32> to vector<2x128xf32>
    %274 = vector.shape_cast %273 : vector<2x128xf32> to vector<2x1x128xf32>
    %275 = vector.shape_cast %271 : vector<8x128xf32> to vector<1x8x128xf32>
    %276 = vector.broadcast %274 : vector<2x1x128xf32> to vector<2x8x128xf32>
    %277 = vector.broadcast %275 : vector<1x8x128xf32> to vector<2x8x128xf32>
    %278 = arith.mulf %276, %277 : vector<2x8x128xf32>
    %279 = arith.addf %269, %278 : vector<2x8x128xf32>
    %c0_58 = arith.constant 0 : index
    %c27 = arith.constant 27 : index
    %c0_59 = arith.constant 0 : index
    %280 = vector.load %arg3[%c0_58, %c27, %c0_59] : memref<8x36x128xf32, #tpu.memory_space<vmem>>, vector<8x1x128xf32>
    %281 = vector.shape_cast %280 : vector<8x1x128xf32> to vector<8x128xf32>
    %282 = vector.extract_strided_slice %249 {offsets = [0, 3, 0], sizes = [2, 1, 128], strides = [1, 1, 1]} : vector<2x4x128xf32> to vector<2x1x128xf32>
    %283 = vector.shape_cast %282 : vector<2x1x128xf32> to vector<2x128xf32>
    %284 = vector.shape_cast %283 : vector<2x128xf32> to vector<2x1x128xf32>
    %285 = vector.shape_cast %281 : vector<8x128xf32> to vector<1x8x128xf32>
    %286 = vector.broadcast %284 : vector<2x1x128xf32> to vector<2x8x128xf32>
    %287 = vector.broadcast %285 : vector<1x8x128xf32> to vector<2x8x128xf32>
    %288 = arith.mulf %286, %287 : vector<2x8x128xf32>
    %289 = arith.addf %279, %288 : vector<2x8x128xf32>
    %290 = vector.extract_strided_slice %2 {offsets = [0, 0, 37], sizes = [2, 4, 128], strides = [1, 1, 1]} : vector<2x4x256xf32> to vector<2x4x128xf32>
    %c0_60 = arith.constant 0 : index
    %c28 = arith.constant 28 : index
    %c0_61 = arith.constant 0 : index
    %291 = vector.load %arg3[%c0_60, %c28, %c0_61] : memref<8x36x128xf32, #tpu.memory_space<vmem>>, vector<8x1x128xf32>
    %292 = vector.shape_cast %291 : vector<8x1x128xf32> to vector<8x128xf32>
    %293 = vector.extract_strided_slice %290 {offsets = [0, 0, 0], sizes = [2, 1, 128], strides = [1, 1, 1]} : vector<2x4x128xf32> to vector<2x1x128xf32>
    %294 = vector.shape_cast %293 : vector<2x1x128xf32> to vector<2x128xf32>
    %295 = vector.shape_cast %294 : vector<2x128xf32> to vector<2x1x128xf32>
    %296 = vector.shape_cast %292 : vector<8x128xf32> to vector<1x8x128xf32>
    %297 = vector.broadcast %295 : vector<2x1x128xf32> to vector<2x8x128xf32>
    %298 = vector.broadcast %296 : vector<1x8x128xf32> to vector<2x8x128xf32>
    %299 = arith.mulf %297, %298 : vector<2x8x128xf32>
    %300 = arith.addf %289, %299 : vector<2x8x128xf32>
    %c0_62 = arith.constant 0 : index
    %c29 = arith.constant 29 : index
    %c0_63 = arith.constant 0 : index
    %301 = vector.load %arg3[%c0_62, %c29, %c0_63] : memref<8x36x128xf32, #tpu.memory_space<vmem>>, vector<8x1x128xf32>
    %302 = vector.shape_cast %301 : vector<8x1x128xf32> to vector<8x128xf32>
    %303 = vector.extract_strided_slice %290 {offsets = [0, 1, 0], sizes = [2, 1, 128], strides = [1, 1, 1]} : vector<2x4x128xf32> to vector<2x1x128xf32>
    %304 = vector.shape_cast %303 : vector<2x1x128xf32> to vector<2x128xf32>
    %305 = vector.shape_cast %304 : vector<2x128xf32> to vector<2x1x128xf32>
    %306 = vector.shape_cast %302 : vector<8x128xf32> to vector<1x8x128xf32>
    %307 = vector.broadcast %305 : vector<2x1x128xf32> to vector<2x8x128xf32>
    %308 = vector.broadcast %306 : vector<1x8x128xf32> to vector<2x8x128xf32>
    %309 = arith.mulf %307, %308 : vector<2x8x128xf32>
    %310 = arith.addf %300, %309 : vector<2x8x128xf32>
    %c0_64 = arith.constant 0 : index
    %c30 = arith.constant 30 : index
    %c0_65 = arith.constant 0 : index
    %311 = vector.load %arg3[%c0_64, %c30, %c0_65] : memref<8x36x128xf32, #tpu.memory_space<vmem>>, vector<8x1x128xf32>
    %312 = vector.shape_cast %311 : vector<8x1x128xf32> to vector<8x128xf32>
    %313 = vector.extract_strided_slice %290 {offsets = [0, 2, 0], sizes = [2, 1, 128], strides = [1, 1, 1]} : vector<2x4x128xf32> to vector<2x1x128xf32>
    %314 = vector.shape_cast %313 : vector<2x1x128xf32> to vector<2x128xf32>
    %315 = vector.shape_cast %314 : vector<2x128xf32> to vector<2x1x128xf32>
    %316 = vector.shape_cast %312 : vector<8x128xf32> to vector<1x8x128xf32>
    %317 = vector.broadcast %315 : vector<2x1x128xf32> to vector<2x8x128xf32>
    %318 = vector.broadcast %316 : vector<1x8x128xf32> to vector<2x8x128xf32>
    %319 = arith.mulf %317, %318 : vector<2x8x128xf32>
    %320 = arith.addf %310, %319 : vector<2x8x128xf32>
    %c0_66 = arith.constant 0 : index
    %c31 = arith.constant 31 : index
    %c0_67 = arith.constant 0 : index
    %321 = vector.load %arg3[%c0_66, %c31, %c0_67] : memref<8x36x128xf32, #tpu.memory_space<vmem>>, vector<8x1x128xf32>
    %322 = vector.shape_cast %321 : vector<8x1x128xf32> to vector<8x128xf32>
    %323 = vector.extract_strided_slice %290 {offsets = [0, 3, 0], sizes = [2, 1, 128], strides = [1, 1, 1]} : vector<2x4x128xf32> to vector<2x1x128xf32>
    %324 = vector.shape_cast %323 : vector<2x1x128xf32> to vector<2x128xf32>
    %325 = vector.shape_cast %324 : vector<2x128xf32> to vector<2x1x128xf32>
    %326 = vector.shape_cast %322 : vector<8x128xf32> to vector<1x8x128xf32>
    %327 = vector.broadcast %325 : vector<2x1x128xf32> to vector<2x8x128xf32>
    %328 = vector.broadcast %326 : vector<1x8x128xf32> to vector<2x8x128xf32>
    %329 = arith.mulf %327, %328 : vector<2x8x128xf32>
    %330 = arith.addf %320, %329 : vector<2x8x128xf32>
    %331 = vector.extract_strided_slice %2 {offsets = [0, 0, 38], sizes = [2, 4, 128], strides = [1, 1, 1]} : vector<2x4x256xf32> to vector<2x4x128xf32>
    %c0_68 = arith.constant 0 : index
    %c32 = arith.constant 32 : index
    %c0_69 = arith.constant 0 : index
    %332 = vector.load %arg3[%c0_68, %c32, %c0_69] : memref<8x36x128xf32, #tpu.memory_space<vmem>>, vector<8x1x128xf32>
    %333 = vector.shape_cast %332 : vector<8x1x128xf32> to vector<8x128xf32>
    %334 = vector.extract_strided_slice %331 {offsets = [0, 0, 0], sizes = [2, 1, 128], strides = [1, 1, 1]} : vector<2x4x128xf32> to vector<2x1x128xf32>
    %335 = vector.shape_cast %334 : vector<2x1x128xf32> to vector<2x128xf32>
    %336 = vector.shape_cast %335 : vector<2x128xf32> to vector<2x1x128xf32>
    %337 = vector.shape_cast %333 : vector<8x128xf32> to vector<1x8x128xf32>
    %338 = vector.broadcast %336 : vector<2x1x128xf32> to vector<2x8x128xf32>
    %339 = vector.broadcast %337 : vector<1x8x128xf32> to vector<2x8x128xf32>
    %340 = arith.mulf %338, %339 : vector<2x8x128xf32>
    %341 = arith.addf %330, %340 : vector<2x8x128xf32>
    %c0_70 = arith.constant 0 : index
    %c33 = arith.constant 33 : index
    %c0_71 = arith.constant 0 : index
    %342 = vector.load %arg3[%c0_70, %c33, %c0_71] : memref<8x36x128xf32, #tpu.memory_space<vmem>>, vector<8x1x128xf32>
    %343 = vector.shape_cast %342 : vector<8x1x128xf32> to vector<8x128xf32>
    %344 = vector.extract_strided_slice %331 {offsets = [0, 1, 0], sizes = [2, 1, 128], strides = [1, 1, 1]} : vector<2x4x128xf32> to vector<2x1x128xf32>
    %345 = vector.shape_cast %344 : vector<2x1x128xf32> to vector<2x128xf32>
    %346 = vector.shape_cast %345 : vector<2x128xf32> to vector<2x1x128xf32>
    %347 = vector.shape_cast %343 : vector<8x128xf32> to vector<1x8x128xf32>
    %348 = vector.broadcast %346 : vector<2x1x128xf32> to vector<2x8x128xf32>
    %349 = vector.broadcast %347 : vector<1x8x128xf32> to vector<2x8x128xf32>
    %350 = arith.mulf %348, %349 : vector<2x8x128xf32>
    %351 = arith.addf %341, %350 : vector<2x8x128xf32>
    %c0_72 = arith.constant 0 : index
    %c34 = arith.constant 34 : index
    %c0_73 = arith.constant 0 : index
    %352 = vector.load %arg3[%c0_72, %c34, %c0_73] : memref<8x36x128xf32, #tpu.memory_space<vmem>>, vector<8x1x128xf32>
    %353 = vector.shape_cast %352 : vector<8x1x128xf32> to vector<8x128xf32>
    %354 = vector.extract_strided_slice %331 {offsets = [0, 2, 0], sizes = [2, 1, 128], strides = [1, 1, 1]} : vector<2x4x128xf32> to vector<2x1x128xf32>
    %355 = vector.shape_cast %354 : vector<2x1x128xf32> to vector<2x128xf32>
    %356 = vector.shape_cast %355 : vector<2x128xf32> to vector<2x1x128xf32>
    %357 = vector.shape_cast %353 : vector<8x128xf32> to vector<1x8x128xf32>
    %358 = vector.broadcast %356 : vector<2x1x128xf32> to vector<2x8x128xf32>
    %359 = vector.broadcast %357 : vector<1x8x128xf32> to vector<2x8x128xf32>
    %360 = arith.mulf %358, %359 : vector<2x8x128xf32>
    %361 = arith.addf %351, %360 : vector<2x8x128xf32>
    %c0_74 = arith.constant 0 : index
    %c35 = arith.constant 35 : index
    %c0_75 = arith.constant 0 : index
    %362 = vector.load %arg3[%c0_74, %c35, %c0_75] : memref<8x36x128xf32, #tpu.memory_space<vmem>>, vector<8x1x128xf32>
    %363 = vector.shape_cast %362 : vector<8x1x128xf32> to vector<8x128xf32>
    %364 = vector.extract_strided_slice %331 {offsets = [0, 3, 0], sizes = [2, 1, 128], strides = [1, 1, 1]} : vector<2x4x128xf32> to vector<2x1x128xf32>
    %365 = vector.shape_cast %364 : vector<2x1x128xf32> to vector<2x128xf32>
    %366 = vector.shape_cast %365 : vector<2x128xf32> to vector<2x1x128xf32>
    %367 = vector.shape_cast %363 : vector<8x128xf32> to vector<1x8x128xf32>
    %368 = vector.broadcast %366 : vector<2x1x128xf32> to vector<2x8x128xf32>
    %369 = vector.broadcast %367 : vector<1x8x128xf32> to vector<2x8x128xf32>
    %370 = arith.mulf %368, %369 : vector<2x8x128xf32>
    %371 = arith.addf %361, %370 : vector<2x8x128xf32>
    %cst_76 = arith.constant 0.000000e+00 : f32
    %372 = vector.broadcast %cst_76 : f32 to vector<2x8x128xf32>
    %373 = arith.cmpf oge, %371, %372 : vector<2x8x128xf32>
    %cst_77 = arith.constant 1.000000e-01 : f32
    %374 = vector.broadcast %cst_77 : f32 to vector<2x8x128xf32>
    %375 = arith.mulf %371, %374 : vector<2x8x128xf32>
    %376 = arith.select %373, %371, %375 : vector<2x8x128xi1>, vector<2x8x128xf32>
    %c0_78 = arith.constant 0 : index
    %c0_79 = arith.constant 0 : index
    %c0_80 = arith.constant 0 : index
    %377 = vector.load %arg4[%c0_78, %c0_79, %c0_80] : memref<2x8x128xf32, #tpu.memory_space<vmem>>, vector<2x8x128xf32>
    tpu.vector_store %arg4[%c0_78, %c0_79, %c0_80], %376 {strides = array<i32>} : memref<2x8x128xf32, #tpu.memory_space<vmem>>, vector<2x8x128xf32>,
    return
  }
  func.func @transform_0(%arg0: i32, %arg1: i32) -> (i32, i32, i32, i32) {
    %c0_i32 = arith.constant 0 : i32
    %c0_i32_0 = arith.constant 0 : i32
    %c0_i32_1 = arith.constant 0 : i32
    %c0_i32_2 = arith.constant 0 : i32
    return %arg0, %c0_i32, %c0_i32_0, %c0_i32_1 : i32, i32, i32, i32
  }
  func.func @transform_1(%arg0: i32, %arg1: i32) -> (i32, i32, i32) {
    %c0_i32 = arith.constant 0 : i32
    %c0_i32_0 = arith.constant 0 : i32
    return %arg1, %c0_i32, %arg0 : i32, i32, i32
  }
  func.func @transform_2(%arg0: i32, %arg1: i32) -> (i32, i32, i32) {
    %c0_i32 = arith.constant 0 : i32
    %c0_i32_0 = arith.constant 0 : i32
    return %c0_i32, %arg1, %arg0 : i32, i32, i32
  }
}

</mosaic_0001>

<llo_original>
// kernel: _lambda_.1
$region0: #{_lambda_.1}
  #allocation0 [shape = 'u32[]', space=smem, size = 0x4, offset = 0x4, fixed_abs, tag = 'smem constant byte address 0x4 - core index']
  #allocation1 [shape = 'u32[144,128]{1,0:T(1,128)}', space=vmem, size = 0x12000, scoped, tag = 'internal scratch']
  %s0 = inlined_call_operand.vmem [shape: f32[3,2,4,256], index: 0, kind: input, shape index: {}]
  %s1 = inlined_call_operand.hbm [shape: f32[8,36,384], index: 1, kind: input, shape index: {}]
  %s2 = inlined_call_operand.vmem [shape: f32[2,8,384], index: 2, kind: output, shape index: {}]
  %s3 = sld [smem:[#allocation0]]
  $region79: #{_lambda_.1} parent=0
    _
  %s5 = ssub.s32 1, %s3
  %s6 = scalar_select 0, %s5, %s3
  $region1: #{_lambda_.1} parent=0
    #allocation2 [shape = 'u8[327680]{0}', space=vmem, size = 0x50000, scoped, tag = 'input window, operand 1']
    #allocation3 [shape = 's32[2]{0}', space=sflag, size = 0x8, scoped, tag = 'scoped memory for _lambda_.1']
    #allocation4 [shape = 'u8[16384]{0}', space=vmem, size = 0x4000, scoped, tag = 'output window, operand 0']
    %7 = vsyncpa [#allocation3], 0
    %s8 = scalar_lea.sflag [#allocation3], 1
    %9 = vsyncpa %s8, 0
    loop: start=0, step=1, limit=5
    $region2: #{_lambda_.1} parent=1 // loop_pre_header
      _
    $region3: #{_lambda_.1} parent=1 // loop_header
      %s11 = sphi 0, %s15
      %p12 = scmp.ge.s32.totalorder %s11, 5
      %s18 = sphi 0, %s30
      %s19 = sphi 0, %s26
      %s20 = sphi 0, %s18
      %s21 = sphi 0, %s19
      %s22 = sphi 0, %s20
      %s23 = sphi 0, %s21
      %s33 = sphi 0, %s35
      %s36 = sphi 0, %s33
      %s37 = sphi 0, %s36
      %s53 = sphi 0, %s37
      %s61 = sphi 0, %s63
      %s64 = sphi 0, %s61
      %s65 = sphi 0, %s64
      %s81 = sphi 0, %s65
      %s89 = sphi 0, %s91
      %s92 = sphi 0, %s89
      %s93 = sphi 0, %s92
      %s109 = sphi 0, %s93
    $region4: #{_lambda_.1} parent=1 // loop_header_branch
      %14 = sbr.rel (%p12) target = $region8
    $region5: #{_lambda_.1} parent=1 // loop_body
      %s16 = ssub.s32 %s11, 1
      %s17 = ssub.s32 %s11, 2
      %s24 = sadd.s32 1, %s19
      %p25 = scmp.ge.s32.totalorder %s24, 1
      %s26 = scalar_select %p25, 0, %s24
      %s27 = sadd.s32 1, %s18
      %s28 = scalar_select %p25, %s27, %s18
      %p29 = scmp.ge.s32.totalorder %s28, 3
      %s30 = scalar_select %p29, 0, %s28
      %s31 = ssub.s32 %s18, %s30
      %p32 = scmp.eq.s32.totalorder %s31, 0
      %s34 = sadd.s32 %s33, 1
      %s35 = scalar_select %p32, %s33, %s34
      %p38 = pneg %p32
      %p39 = scmp.eq.s32.totalorder %s11, 2
      %p40 = por %p38, %p39
      %p41 = scmp.ne.s32.totalorder %s33, %s36
      %p42 = scmp.eq.s32.totalorder %s11, 0
      %p43 = por %p41, %p42
      %p44 = scmp.ne.s32.totalorder %s33, %s36
      %p45 = scmp.eq.s32.totalorder %s16, 2
      %p46 = por %p44, %p45
      %p47 = scmp.ne.s32.totalorder %s36, %s37
      %p48 = scmp.eq.s32.totalorder %s16, 0
      %p49 = por %p47, %p48
      %p50 = scmp.ne.s32.totalorder %s36, %s37
      %p51 = scmp.eq.s32.totalorder %s17, 2
      %p52 = por %p50, %p51
      %p54 = scmp.ne.s32.totalorder %s37, %s53
      %p55 = scmp.eq.s32.totalorder %s17, 0
      %p56 = por %p54, %p55
      %s57 = ssub.s32 %s19, %s26
      %s58 = ssub.s32 %s18, %s30
      %s59 = sor.u32 %s57, %s58
      %p60 = scmp.eq.s32.totalorder %s59, 0
      %s62 = sadd.s32 %s61, 1
      %s63 = scalar_select %p60, %s61, %s62
      %p66 = pneg %p60
      %p67 = scmp.eq.s32.totalorder %s11, 2
      %p68 = por %p66, %p67
      %p69 = scmp.ne.s32.totalorder %s61, %s64
      %p70 = scmp.eq.s32.totalorder %s11, 0
      %p71 = por %p69, %p70
      %p72 = scmp.ne.s32.totalorder %s61, %s64
      %p73 = scmp.eq.s32.totalorder %s16, 2
      %p74 = por %p72, %p73
      %p75 = scmp.ne.s32.totalorder %s64, %s65
      %p76 = scmp.eq.s32.totalorder %s16, 0
      %p77 = por %p75, %p76
      %p78 = scmp.ne.s32.totalorder %s64, %s65
      %p79 = scmp.eq.s32.totalorder %s17, 2
      %p80 = por %p78, %p79
      %p82 = scmp.ne.s32.totalorder %s65, %s81
      %p83 = scmp.eq.s32.totalorder %s17, 0
      %p84 = por %p82, %p83
      %s85 = ssub.s32 %s19, %s26
      %s86 = ssub.s32 %s18, %s30
      %s87 = sor.u32 %s85, %s86
      %p88 = scmp.eq.s32.totalorder %s87, 0
      %s90 = sadd.s32 %s89, 1
      %s91 = scalar_select %p88, %s89, %s90
      %p94 = pneg %p88
      %p95 = scmp.eq.s32.totalorder %s11, 2
      %p96 = por %p94, %p95
      %p97 = scmp.ne.s32.totalorder %s89, %s92
      %p98 = scmp.eq.s32.totalorder %s11, 0
      %p99 = por %p97, %p98
      %p100 = scmp.ne.s32.totalorder %s89, %s92
      %p101 = scmp.eq.s32.totalorder %s16, 2
      %p102 = por %p100, %p101
      %p103 = scmp.ne.s32.totalorder %s92, %s93
      %p104 = scmp.eq.s32.totalorder %s16, 0
      %p105 = por %p103, %p104
      %p106 = scmp.ne.s32.totalorder %s92, %s93
      %p107 = scmp.eq.s32.totalorder %s17, 2
      %p108 = por %p106, %p107
      %p110 = scmp.ne.s32.totalorder %s93, %s109
      %p111 = scmp.eq.s32.totalorder %s17, 0
      %p112 = por %p110, %p111
      %p113 = scmp.le.s32.totalorder 1, %s11
      %p114 = scmp.lt.s32.totalorder %s11, 4
      %p115 = pnand %p113, %p114
      %p116 = pneg %p115
      // Predicated region
      $region9: #{_lambda_.1} parent=5 // pred_check
        _
      $region10: #{_lambda_.1} parent=5 // pred_check_branch
        %118 = sbr.rel (%p115) target = $region12
      $region11: #{_lambda_.1} parent=5 // pred_region
        %s119 = ssub.s32 %s11, 1
      $region12: #{_lambda_.1} parent=5 // pred_fallthru
        _
      %p120 = scmp.lt.s32.totalorder %s11, 3
      // Predicated region
      $region13: #{_lambda_.1} parent=5 // pred_check
        %p121 = pneg %p120
      $region14: #{_lambda_.1} parent=5 // pred_check_branch
        %123 = sbr.rel (%p121) target = $region16
      $region15: #{_lambda_.1} parent=5 // pred_region
        // Predicated region
        $region17: #{_lambda_.1} parent=15 // pred_check
          %p124 = pneg %p43
        $region18: #{_lambda_.1} parent=15 // pred_check_branch
          %126 = sbr.rel (%p124) target = $region20
        $region19: #{_lambda_.1} parent=15 // pred_region
          %p127 = scmp.lt.s32.totalorder %s18, 2
          %s128 = scalar_select %p127, %s18, 2
          %s129 = smul.addr %s128, 4
          %s130 = smul.addr %s129, 4
          %s131 = scalar_lea.vmem %s0, %s130
        $region20: #{_lambda_.1} parent=15 // pred_fallthru
          _
        // Predicated region
        $region21: #{_lambda_.1} parent=15 // pred_check
          %p132 = pneg %p71
        $region22: #{_lambda_.1} parent=15 // pred_check_branch
          %134 = sbr.rel (%p132) target = $region24
        $region23: #{_lambda_.1} parent=15 // pred_region
          %s135 = sand.u32 %s61, 1
          %s136 = scalar_lea.sflag [#allocation3], %s135
          %s137 = sand.u32 %s61, 1
          %s138 = smul.addr %s137, 320
          %s139 = scalar_lea.vmem [#allocation2], %s138
          %s140 = smul.u32 8, %s19
          %s142 = ssub.s32 5120, 5120
          %143 = vsyncadd %s136, %s142
          %s144 = smul.addr %s140, 15
          %s145 = sadd.s32 %s18, %s144
          %s146 = smul.addr %s145, 128
          %s147 = scalar_lea.hbm %s1, %s146
          %s148 = sshll.u32 %s139, 4
          %s149 = int_to_ptr.vmem [resolvable:$true] %s148
          %154 = dma.hbm_to_vmem [thread:$0]  %s147, 5120, %s149, %s136, 384, 128, 8
        $region24: #{_lambda_.1} parent=15 // pred_fallthru
          _
      $region16: #{_lambda_.1} parent=5 // pred_fallthru
        _
      %p155 = scmp.le.s32.totalorder 1, %s11
      %p156 = scmp.lt.s32.totalorder %s11, 4
      %p157 = pnand %p155, %p156
      %p158 = pneg %p157
      // Predicated region
      $region25: #{_lambda_.1} parent=5 // pred_check
        _
      $region26: #{_lambda_.1} parent=5 // pred_check_branch
        %160 = sbr.rel (%p157) target = $region28
      $region27: #{_lambda_.1} parent=5 // pred_region
        %s161 = ssub.s32 %s11, 1
        %s162 = sand.u32 %s64, 1
        %s163 = scalar_lea.sflag [#allocation3], %s162
        %s164 = sand.u32 %s64, 1
        %s165 = smul.addr %s164, 320
        %s166 = scalar_lea.vmem [#allocation2], %s165
        // Predicated region
        $region29: #{_lambda_.1} parent=27 // pred_check
          %p167 = pneg %p77
        $region30: #{_lambda_.1} parent=27 // pred_check_branch
          %169 = sbr.rel (%p167) target = $region32
        $region31: #{_lambda_.1} parent=27 // pred_region
          %170 = dma.done %s163, 5120
        $region32: #{_lambda_.1} parent=27 // pred_fallthru
          _
        %p171 = scmp.lt.s32.totalorder %s20, 2
        %s172 = scalar_select %p171, %s20, 2
        %s173 = smul.addr %s172, 4
        %s174 = smul.addr %s173, 4
        %s175 = scalar_lea.vmem %s0, %s174
        %p176 = pneg %p49
        %p177 = pneg %p46
        %s178 = sand.u32 %s64, 1
        %s179 = scalar_lea.sflag [#allocation3], %s178
        %s180 = sand.u32 %s64, 1
        %s181 = smul.addr %s180, 320
        %s182 = scalar_lea.vmem [#allocation2], %s181
        %p183 = pneg %p77
        %p184 = pneg %p74
        %p185 = pneg %p105
        %p186 = pneg %p102
        %s187 = sand.u32 %s92, 1
        %s188 = sand.u32 %s92, 1
        %s189 = smul.addr %s188, 16
        %s190 = scalar_lea.vmem [#allocation4], %s189
        %p191 = scmp.lt.s32.totalorder %s20, 2
        %s192 = scalar_select %p191, %s20, 2
        %s193 = smul.addr %s192, 4
        %s194 = smul.addr %s193, 4
        %s195 = scalar_lea.vmem %s0, %s194
        %s196 = smul.u32 8, %s21
        %v197 = vld [vmem:[%s195] sm:$0xff]
        %v198 = vld [vmem:[%s195 + $0x8] sm:$0xff]
        %v199 = vld [vmem:[%s166] sm:$0x1]
        %v200 = vld [vmem:[%s166 + $0x28] sm:$0x1]
        %v201 = vld [vmem:[%s166 + $0x50] sm:$0x1]
        %v202 = vld [vmem:[%s166 + $0x78] sm:$0x1]
        %v203 = vld [vmem:[%s166 + $0xa0] sm:$0x1]
        %v204 = vld [vmem:[%s166 + $0xc8] sm:$0x1]
        %v205 = vld [vmem:[%s166 + $0xf0] sm:$0x1]
        %v206 = vld [vmem:[%s166 + $0x118] sm:$0x1]
        %v207 = vlaneseq
        %v208 = vshrl.u32 %v207, 7
        %v209 = vsub.s32 0, %v208
        %v210 = vrot.slane %v197, %v209
        %v211 = vlaneseq
        %v212 = vshrl.u32 %v211, 7
        %v213 = vsub.s32 0, %v212
        %v214 = vrot.slane %v198, %v213
        %v223 = vrot.slane %v200, 7
        %vm224 = vcmask 1041409
        %v225 = vsel %vm224, %v223, %v199
        %v226 = vrot.slane %v201, 6
        %vm227 = vcmask 1042434
        %v228 = vsel %vm227, %v226, %v225
        %v229 = vrot.slane %v202, 5
        %vm230 = vcmask 1043459
        %v231 = vsel %vm230, %v229, %v228
        %v232 = vrot.slane %v203, 4
        %vm233 = vcmask 1044484
        %v234 = vsel %vm233, %v232, %v231
        %v235 = vrot.slane %v204, 3
        %vm236 = vcmask 1045509
        %v237 = vsel %vm236, %v235, %v234
        %v238 = vrot.slane %v205, 2
        %vm239 = vcmask 1046534
        %v240 = vsel %vm239, %v238, %v237
        %v241 = vrot.slane %v206, 1
        %vm242 = vcmask 1047559
        %v243 = vsel %vm242, %v241, %v240
        %v245 = vmul.f32 %v210, %v243
        %v246 = vmul.f32 %v214, %v243
        %v247 = vadd.f32 %v245, 0.0
        %v248 = vadd.f32 %v246, 0.0
        %v249 = vld [vmem:[%s166 + $0x1] sm:$0x1]
        %v250 = vld [vmem:[%s166 + $0x29] sm:$0x1]
        %v251 = vld [vmem:[%s166 + $0x51] sm:$0x1]
        %v252 = vld [vmem:[%s166 + $0x79] sm:$0x1]
        %v253 = vld [vmem:[%s166 + $0xa1] sm:$0x1]
        %v254 = vld [vmem:[%s166 + $0xc9] sm:$0x1]
        %v255 = vld [vmem:[%s166 + $0xf1] sm:$0x1]
        %v256 = vld [vmem:[%s166 + $0x119] sm:$0x1]
        %v257 = vlaneseq
        %v258 = vshrl.u32 %v257, 7
        %v259 = vsub.s32 1, %v258
        %v260 = vrot.slane %v197, %v259
        %v261 = vlaneseq
        %v262 = vshrl.u32 %v261, 7
        %v263 = vsub.s32 1, %v262
        %v264 = vrot.slane %v198, %v263
        %v273 = vrot.slane %v250, 7
        %v274 = vsel %vm224, %v273, %v249
        %v275 = vrot.slane %v251, 6
        %v276 = vsel %vm227, %v275, %v274
        %v277 = vrot.slane %v252, 5
        %v278 = vsel %vm230, %v277, %v276
        %v279 = vrot.slane %v253, 4
        %v280 = vsel %vm233, %v279, %v278
        %v281 = vrot.slane %v254, 3
        %v282 = vsel %vm236, %v281, %v280
        %v283 = vrot.slane %v255, 2
        %v284 = vsel %vm239, %v283, %v282
        %v285 = vrot.slane %v256, 1
        %v286 = vsel %vm242, %v285, %v284
        %v288 = vmul.f32 %v260, %v286
        %v289 = vmul.f32 %v264, %v286
        %v290 = vadd.f32 %v247, %v288
        %v291 = vadd.f32 %v248, %v289
        %v292 = vld [vmem:[%s166 + $0x2] sm:$0x1]
        %v293 = vld [vmem:[%s166 + $0x2a] sm:$0x1]
        %v294 = vld [vmem:[%s166 + $0x52] sm:$0x1]
        %v295 = vld [vmem:[%s166 + $0x7a] sm:$0x1]
        %v296 = vld [vmem:[%s166 + $0xa2] sm:$0x1]
        %v297 = vld [vmem:[%s166 + $0xca] sm:$0x1]
        %v298 = vld [vmem:[%s166 + $0xf2] sm:$0x1]
        %v299 = vld [vmem:[%s166 + $0x11a] sm:$0x1]
        %v300 = vlaneseq
        %v301 = vshrl.u32 %v300, 7
        %v302 = vsub.s32 2, %v301
        %v303 = vrot.slane %v197, %v302
        %v304 = vlaneseq
        %v305 = vshrl.u32 %v304, 7
        %v306 = vsub.s32 2, %v305
        %v307 = vrot.slane %v198, %v306
        %v316 = vrot.slane %v293, 7
        %v317 = vsel %vm224, %v316, %v292
        %v318 = vrot.slane %v294, 6
        %v319 = vsel %vm227, %v318, %v317
        %v320 = vrot.slane %v295, 5
        %v321 = vsel %vm230, %v320, %v319
        %v322 = vrot.slane %v296, 4
        %v323 = vsel %vm233, %v322, %v321
        %v324 = vrot.slane %v297, 3
        %v325 = vsel %vm236, %v324, %v323
        %v326 = vrot.slane %v298, 2
        %v327 = vsel %vm239, %v326, %v325
        %v328 = vrot.slane %v299, 1
        %v329 = vsel %vm242, %v328, %v327
        %v331 = vmul.f32 %v303, %v329
        %v332 = vmul.f32 %v307, %v329
        %v333 = vadd.f32 %v290, %v331
        %v334 = vadd.f32 %v291, %v332
        %v335 = vld [vmem:[%s166 + $0x3] sm:$0x1]
        %v336 = vld [vmem:[%s166 + $0x2b] sm:$0x1]
        %v337 = vld [vmem:[%s166 + $0x53] sm:$0x1]
        %v338 = vld [vmem:[%s166 + $0x7b] sm:$0x1]
        %v339 = vld [vmem:[%s166 + $0xa3] sm:$0x1]
        %v340 = vld [vmem:[%s166 + $0xcb] sm:$0x1]
        %v341 = vld [vmem:[%s166 + $0xf3] sm:$0x1]
        %v342 = vld [vmem:[%s166 + $0x11b] sm:$0x1]
        %v343 = vlaneseq
        %v344 = vshrl.u32 %v343, 7
        %v345 = vsub.s32 3, %v344
        %v346 = vrot.slane %v197, %v345
        %v347 = vlaneseq
        %v348 = vshrl.u32 %v347, 7
        %v349 = vsub.s32 3, %v348
        %v350 = vrot.slane %v198, %v349
        %v359 = vrot.slane %v336, 7
        %v360 = vsel %vm224, %v359, %v335
        %v361 = vrot.slane %v337, 6
        %v362 = vsel %vm227, %v361, %v360
        %v363 = vrot.slane %v338, 5
        %v364 = vsel %vm230, %v363, %v362
        %v365 = vrot.slane %v339, 4
        %v366 = vsel %vm233, %v365, %v364
        %v367 = vrot.slane %v340, 3
        %v368 = vsel %vm236, %v367, %v366
        %v369 = vrot.slane %v341, 2
        %v370 = vsel %vm239, %v369, %v368
        %v371 = vrot.slane %v342, 1
        %v372 = vsel %vm242, %v371, %v370
        %v374 = vmul.f32 %v346, %v372
        %v375 = vmul.f32 %v350, %v372
        %v376 = vadd.f32 %v333, %v374
        %v377 = vadd.f32 %v334, %v375
        %v378 = vld [vmem:[%s166 + $0x4] sm:$0x1]
        %v379 = vld [vmem:[%s166 + $0x2c] sm:$0x1]
        %v380 = vld [vmem:[%s166 + $0x54] sm:$0x1]
        %v381 = vld [vmem:[%s166 + $0x7c] sm:$0x1]
        %v382 = vld [vmem:[%s166 + $0xa4] sm:$0x1]
        %v383 = vld [vmem:[%s166 + $0xcc] sm:$0x1]
        %v384 = vld [vmem:[%s166 + $0xf4] sm:$0x1]
        %v385 = vld [vmem:[%s166 + $0x11c] sm:$0x1]
        %v388 = vlaneseq
        %v389 = vshrl.u32 %v388, 7
        %v390 = vsub.s32 0, %v389
        %v391 = vrot.slane %v197, %v390
        %v392 = vlaneseq
        %v393 = vshrl.u32 %v392, 7
        %v394 = vsub.s32 4, %v393
        %v395 = vrot.slane %v197, %v394
        %v396 = vlaneseq
        %v397 = vshrl.u32 %v396, 7
        %v398 = vsub.s32 0, %v397
        %v399 = vrot.slane %v198, %v398
        %v400 = vlaneseq
        %v401 = vshrl.u32 %v400, 7
        %v402 = vsub.s32 4, %v401
        %v403 = vrot.slane %v198, %v402
        %v408 = vlaneseq
        %v409 = vshrl.u32 %v408, 7
        %v410 = vsub.s32 0, %v409
        %v411 = vrot.slane %v391, %v410
        %v412 = vlaneseq
        %v413 = vshrl.u32 %v412, 7
        %v414 = vsub.s32 0, %v413
        %v415 = vrot.slane %v395, %v414
        %v416 = vlaneseq
        %v417 = vshrl.u32 %v416, 7
        %v418 = vsub.s32 0, %v417
        %v419 = vrot.slane %v399, %v418
        %v420 = vlaneseq
        %v421 = vshrl.u32 %v420, 7
        %v422 = vsub.s32 0, %v421
        %v423 = vrot.slane %v403, %v422
        %v432 = vrot.slane %v379, 7
        %v433 = vsel %vm224, %v432, %v378
        %v434 = vrot.slane %v380, 6
        %v435 = vsel %vm227, %v434, %v433
        %v436 = vrot.slane %v381, 5
        %v437 = vsel %vm230, %v436, %v435
        %v438 = vrot.slane %v382, 4
        %v439 = vsel %vm233, %v438, %v437
        %v440 = vrot.slane %v383, 3
        %v441 = vsel %vm236, %v440, %v439
        %v442 = vrot.slane %v384, 2
        %v443 = vsel %vm239, %v442, %v441
        %v444 = vrot.slane %v385, 1
        %v445 = vsel %vm242, %v444, %v443
        %446 = vrot.lane.b32.xlu0 %v445, 1
        %v447 = vpop.permute.xlu0 %446
        %v449 = vmul.f32 %v411, %v447
        %v450 = vmul.f32 %v415, %v447
        %v451 = vmul.f32 %v419, %v447
        %v452 = vmul.f32 %v423, %v447
        %457 = vrot.lane.b32.xlu0 %v449, 127
        %v458 = vpop.permute.xlu0 %457
        %459 = vrot.lane.b32.xlu0 %v450, 127
        %v460 = vpop.permute.xlu0 %459
        %461 = vrot.lane.b32.xlu0 %v451, 127
        %v462 = vpop.permute.xlu0 %461
        %463 = vrot.lane.b32.xlu0 %v452, 127
        %v464 = vpop.permute.xlu0 %463
        %vm465 = vcmask 1039360
        %v466 = vsel %vm465, %v458, %v460
        %v467 = vsel %vm465, %v462, %v464
        %v470 = vadd.f32 %v376, %v466
        %v471 = vadd.f32 %v377, %v467
        %v472 = vld [vmem:[%s166 + $0x5] sm:$0x1]
        %v473 = vld [vmem:[%s166 + $0x2d] sm:$0x1]
        %v474 = vld [vmem:[%s166 + $0x55] sm:$0x1]
        %v475 = vld [vmem:[%s166 + $0x7d] sm:$0x1]
        %v476 = vld [vmem:[%s166 + $0xa5] sm:$0x1]
        %v477 = vld [vmem:[%s166 + $0xcd] sm:$0x1]
        %v478 = vld [vmem:[%s166 + $0xf5] sm:$0x1]
        %v479 = vld [vmem:[%s166 + $0x11d] sm:$0x1]
        %v480 = vlaneseq
        %v481 = vshrl.u32 %v480, 7
        %v482 = vsub.s32 1, %v481
        %v483 = vrot.slane %v197, %v482
        %v484 = vlaneseq
        %v485 = vshrl.u32 %v484, 7
        %v486 = vsub.s32 5, %v485
        %v487 = vrot.slane %v197, %v486
        %v488 = vlaneseq
        %v489 = vshrl.u32 %v488, 7
        %v490 = vsub.s32 1, %v489
        %v491 = vrot.slane %v198, %v490
        %v492 = vlaneseq
        %v493 = vshrl.u32 %v492, 7
        %v494 = vsub.s32 5, %v493
        %v495 = vrot.slane %v198, %v494
        %v500 = vlaneseq
        %v501 = vshrl.u32 %v500, 7
        %v502 = vsub.s32 1, %v501
        %v503 = vrot.slane %v483, %v502
        %v504 = vlaneseq
        %v505 = vshrl.u32 %v504, 7
        %v506 = vsub.s32 1, %v505
        %v507 = vrot.slane %v487, %v506
        %v508 = vlaneseq
        %v509 = vshrl.u32 %v508, 7
        %v510 = vsub.s32 1, %v509
        %v511 = vrot.slane %v491, %v510
        %v512 = vlaneseq
        %v513 = vshrl.u32 %v512, 7
        %v514 = vsub.s32 1, %v513
        %v515 = vrot.slane %v495, %v514
        %v524 = vrot.slane %v473, 7
        %v525 = vsel %vm224, %v524, %v472
        %v526 = vrot.slane %v474, 6
        %v527 = vsel %vm227, %v526, %v525
        %v528 = vrot.slane %v475, 5
        %v529 = vsel %vm230, %v528, %v527
        %v530 = vrot.slane %v476, 4
        %v531 = vsel %vm233, %v530, %v529
        %v532 = vrot.slane %v477, 3
        %v533 = vsel %vm236, %v532, %v531
        %v534 = vrot.slane %v478, 2
        %v535 = vsel %vm239, %v534, %v533
        %v536 = vrot.slane %v479, 1
        %v537 = vsel %vm242, %v536, %v535
        %538 = vrot.lane.b32.xlu0 %v537, 1
        %v539 = vpop.permute.xlu0 %538
        %v541 = vmul.f32 %v503, %v539
        %v542 = vmul.f32 %v507, %v539
        %v543 = vmul.f32 %v511, %v539
        %v544 = vmul.f32 %v515, %v539
        %549 = vrot.lane.b32.xlu0 %v541, 127
        %v550 = vpop.permute.xlu0 %549
        %551 = vrot.lane.b32.xlu0 %v542, 127
        %v552 = vpop.permute.xlu0 %551
        %553 = vrot.lane.b32.xlu0 %v543, 127
        %v554 = vpop.permute.xlu0 %553
        %555 = vrot.lane.b32.xlu0 %v544, 127
        %v556 = vpop.permute.xlu0 %555
        %v557 = vsel %vm465, %v550, %v552
        %v558 = vsel %vm465, %v554, %v556
        %v561 = vadd.f32 %v470, %v557
        %v562 = vadd.f32 %v471, %v558
        %v563 = vld [vmem:[%s166 + $0x6] sm:$0x1]
        %v564 = vld [vmem:[%s166 + $0x2e] sm:$0x1]
        %v565 = vld [vmem:[%s166 + $0x56] sm:$0x1]
        %v566 = vld [vmem:[%s166 + $0x7e] sm:$0x1]
        %v567 = vld [vmem:[%s166 + $0xa6] sm:$0x1]
        %v568 = vld [vmem:[%s166 + $0xce] sm:$0x1]
        %v569 = vld [vmem:[%s166 + $0xf6] sm:$0x1]
        %v570 = vld [vmem:[%s166 + $0x11e] sm:$0x1]
        %v571 = vlaneseq
        %v572 = vshrl.u32 %v571, 7
        %v573 = vsub.s32 2, %v572
        %v574 = vrot.slane %v197, %v573
        %v575 = vlaneseq
        %v576 = vshrl.u32 %v575, 7
        %v577 = vsub.s32 6, %v576
        %v578 = vrot.slane %v197, %v577
        %v579 = vlaneseq
        %v580 = vshrl.u32 %v579, 7
        %v581 = vsub.s32 2, %v580
        %v582 = vrot.slane %v198, %v581
        %v583 = vlaneseq
        %v584 = vshrl.u32 %v583, 7
        %v585 = vsub.s32 6, %v584
        %v586 = vrot.slane %v198, %v585
        %v591 = vlaneseq
        %v592 = vshrl.u32 %v591, 7
        %v593 = vsub.s32 2, %v592
        %v594 = vrot.slane %v574, %v593
        %v595 = vlaneseq
        %v596 = vshrl.u32 %v595, 7
        %v597 = vsub.s32 2, %v596
        %v598 = vrot.slane %v578, %v597
        %v599 = vlaneseq
        %v600 = vshrl.u32 %v599, 7
        %v601 = vsub.s32 2, %v600
        %v602 = vrot.slane %v582, %v601
        %v603 = vlaneseq
        %v604 = vshrl.u32 %v603, 7
        %v605 = vsub.s32 2, %v604
        %v606 = vrot.slane %v586, %v605
        %v615 = vrot.slane %v564, 7
        %v616 = vsel %vm224, %v615, %v563
        %v617 = vrot.slane %v565, 6
        %v618 = vsel %vm227, %v617, %v616
        %v619 = vrot.slane %v566, 5
        %v620 = vsel %vm230, %v619, %v618
        %v621 = vrot.slane %v567, 4
        %v622 = vsel %vm233, %v621, %v620
        %v623 = vrot.slane %v568, 3
        %v624 = vsel %vm236, %v623, %v622
        %v625 = vrot.slane %v569, 2
        %v626 = vsel %vm239, %v625, %v624
        %v627 = vrot.slane %v570, 1
        %v628 = vsel %vm242, %v627, %v626
        %629 = vrot.lane.b32.xlu0 %v628, 1
        %v630 = vpop.permute.xlu0 %629
        %v632 = vmul.f32 %v594, %v630
        %v633 = vmul.f32 %v598, %v630
        %v634 = vmul.f32 %v602, %v630
        %v635 = vmul.f32 %v606, %v630
        %640 = vrot.lane.b32.xlu0 %v632, 127
        %v641 = vpop.permute.xlu0 %640
        %642 = vrot.lane.b32.xlu0 %v633, 127
        %v643 = vpop.permute.xlu0 %642
        %644 = vrot.lane.b32.xlu0 %v634, 127
        %v645 = vpop.permute.xlu0 %644
        %646 = vrot.lane.b32.xlu0 %v635, 127
        %v647 = vpop.permute.xlu0 %646
        %v648 = vsel %vm465, %v641, %v643
        %v649 = vsel %vm465, %v645, %v647
        %v652 = vadd.f32 %v561, %v648
        %v653 = vadd.f32 %v562, %v649
        %v654 = vld [vmem:[%s166 + $0x7] sm:$0x1]
        %v655 = vld [vmem:[%s166 + $0x2f] sm:$0x1]
        %v656 = vld [vmem:[%s166 + $0x57] sm:$0x1]
        %v657 = vld [vmem:[%s166 + $0x7f] sm:$0x1]
        %v658 = vld [vmem:[%s166 + $0xa7] sm:$0x1]
        %v659 = vld [vmem:[%s166 + $0xcf] sm:$0x1]
        %v660 = vld [vmem:[%s166 + $0xf7] sm:$0x1]
        %v661 = vld [vmem:[%s166 + $0x11f] sm:$0x1]
        %v662 = vlaneseq
        %v663 = vshrl.u32 %v662, 7
        %v664 = vsub.s32 3, %v663
        %v665 = vrot.slane %v197, %v664
        %v666 = vlaneseq
        %v667 = vshrl.u32 %v666, 7
        %v668 = vsub.s32 7, %v667
        %v669 = vrot.slane %v197, %v668
        %v670 = vlaneseq
        %v671 = vshrl.u32 %v670, 7
        %v672 = vsub.s32 3, %v671
        %v673 = vrot.slane %v198, %v672
        %v674 = vlaneseq
        %v675 = vshrl.u32 %v674, 7
        %v676 = vsub.s32 7, %v675
        %v677 = vrot.slane %v198, %v676
        %v682 = vlaneseq
        %v683 = vshrl.u32 %v682, 7
        %v684 = vsub.s32 3, %v683
        %v685 = vrot.slane %v665, %v684
        %v686 = vlaneseq
        %v687 = vshrl.u32 %v686, 7
        %v688 = vsub.s32 3, %v687
        %v689 = vrot.slane %v669, %v688
        %v690 = vlaneseq
        %v691 = vshrl.u32 %v690, 7
        %v692 = vsub.s32 3, %v691
        %v693 = vrot.slane %v673, %v692
        %v694 = vlaneseq
        %v695 = vshrl.u32 %v694, 7
        %v696 = vsub.s32 3, %v695
        %v697 = vrot.slane %v677, %v696
        %v706 = vrot.slane %v655, 7
        %v707 = vsel %vm224, %v706, %v654
        %v708 = vrot.slane %v656, 6
        %v709 = vsel %vm227, %v708, %v707
        %v710 = vrot.slane %v657, 5
        %v711 = vsel %vm230, %v710, %v709
        %v712 = vrot.slane %v658, 4
        %v713 = vsel %vm233, %v712, %v711
        %v714 = vrot.slane %v659, 3
        %v715 = vsel %vm236, %v714, %v713
        %v716 = vrot.slane %v660, 2
        %v717 = vsel %vm239, %v716, %v715
        %v718 = vrot.slane %v661, 1
        %v719 = vsel %vm242, %v718, %v717
        %720 = vrot.lane.b32.xlu0 %v719, 1
        %v721 = vpop.permute.xlu0 %720
        %v723 = vmul.f32 %v685, %v721
        %v724 = vmul.f32 %v689, %v721
        %v725 = vmul.f32 %v693, %v721
        %v726 = vmul.f32 %v697, %v721
        %731 = vrot.lane.b32.xlu0 %v723, 127
        %v732 = vpop.permute.xlu0 %731
        %733 = vrot.lane.b32.xlu0 %v724, 127
        %v734 = vpop.permute.xlu0 %733
        %735 = vrot.lane.b32.xlu0 %v725, 127
        %v736 = vpop.permute.xlu0 %735
        %737 = vrot.lane.b32.xlu0 %v726, 127
        %v738 = vpop.permute.xlu0 %737
        %v739 = vsel %vm465, %v732, %v734
        %v740 = vsel %vm465, %v736, %v738
        %v743 = vadd.f32 %v652, %v739
        %v744 = vadd.f32 %v653, %v740
        %v745 = vld [vmem:[%s166 + $0x8] sm:$0x1]
        %v746 = vld [vmem:[%s166 + $0x30] sm:$0x1]
        %v747 = vld [vmem:[%s166 + $0x58] sm:$0x1]
        %v748 = vld [vmem:[%s166 + $0x80] sm:$0x1]
        %v749 = vld [vmem:[%s166 + $0xa8] sm:$0x1]
        %v750 = vld [vmem:[%s166 + $0xd0] sm:$0x1]
        %v751 = vld [vmem:[%s166 + $0xf8] sm:$0x1]
        %v752 = vld [vmem:[%s166 + $0x120] sm:$0x1]
        %v761 = vrot.slane %v746, 7
        %v762 = vsel %vm224, %v761, %v745
        %v763 = vrot.slane %v747, 6
        %v764 = vsel %vm227, %v763, %v762
        %v765 = vrot.slane %v748, 5
        %v766 = vsel %vm230, %v765, %v764
        %v767 = vrot.slane %v749, 4
        %v768 = vsel %vm233, %v767, %v766
        %v769 = vrot.slane %v750, 3
        %v770 = vsel %vm236, %v769, %v768
        %v771 = vrot.slane %v751, 2
        %v772 = vsel %vm239, %v771, %v770
        %v773 = vrot.slane %v752, 1
        %v774 = vsel %vm242, %v773, %v772
        %775 = vrot.lane.b32.xlu0 %v774, 2
        %v776 = vpop.permute.xlu0 %775
        %v778 = vmul.f32 %v411, %v776
        %v779 = vmul.f32 %v415, %v776
        %v780 = vmul.f32 %v419, %v776
        %v781 = vmul.f32 %v423, %v776
        %786 = vrot.lane.b32.xlu0 %v778, 126
        %v787 = vpop.permute.xlu0 %786
        %788 = vrot.lane.b32.xlu0 %v779, 126
        %v789 = vpop.permute.xlu0 %788
        %790 = vrot.lane.b32.xlu0 %v780, 126
        %v791 = vpop.permute.xlu0 %790
        %792 = vrot.lane.b32.xlu0 %v781, 126
        %v793 = vpop.permute.xlu0 %792
        %vm794 = vcmask 1031168
        %v795 = vsel %vm794, %v787, %v789
        %v796 = vsel %vm794, %v791, %v793
        %v799 = vadd.f32 %v743, %v795
        %v800 = vadd.f32 %v744, %v796
        %v801 = vld [vmem:[%s166 + $0x9] sm:$0x1]
        %v802 = vld [vmem:[%s166 + $0x31] sm:$0x1]
        %v803 = vld [vmem:[%s166 + $0x59] sm:$0x1]
        %v804 = vld [vmem:[%s166 + $0x81] sm:$0x1]
        %v805 = vld [vmem:[%s166 + $0xa9] sm:$0x1]
        %v806 = vld [vmem:[%s166 + $0xd1] sm:$0x1]
        %v807 = vld [vmem:[%s166 + $0xf9] sm:$0x1]
        %v808 = vld [vmem:[%s166 + $0x121] sm:$0x1]
        %v817 = vrot.slane %v802, 7
        %v818 = vsel %vm224, %v817, %v801
        %v819 = vrot.slane %v803, 6
        %v820 = vsel %vm227, %v819, %v818
        %v821 = vrot.slane %v804, 5
        %v822 = vsel %vm230, %v821, %v820
        %v823 = vrot.slane %v805, 4
        %v824 = vsel %vm233, %v823, %v822
        %v825 = vrot.slane %v806, 3
        %v826 = vsel %vm236, %v825, %v824
        %v827 = vrot.slane %v807, 2
        %v828 = vsel %vm239, %v827, %v826
        %v829 = vrot.slane %v808, 1
        %v830 = vsel %vm242, %v829, %v828
        %831 = vrot.lane.b32.xlu0 %v830, 2
        %v832 = vpop.permute.xlu0 %831
        %v834 = vmul.f32 %v503, %v832
        %v835 = vmul.f32 %v507, %v832
        %v836 = vmul.f32 %v511, %v832
        %v837 = vmul.f32 %v515, %v832
        %842 = vrot.lane.b32.xlu0 %v834, 126
        %v843 = vpop.permute.xlu0 %842
        %844 = vrot.lane.b32.xlu0 %v835, 126
        %v845 = vpop.permute.xlu0 %844
        %846 = vrot.lane.b32.xlu0 %v836, 126
        %v847 = vpop.permute.xlu0 %846
        %848 = vrot.lane.b32.xlu0 %v837, 126
        %v849 = vpop.permute.xlu0 %848
        %v850 = vsel %vm794, %v843, %v845
        %v851 = vsel %vm794, %v847, %v849
        %v854 = vadd.f32 %v799, %v850
        %v855 = vadd.f32 %v800, %v851
        %v856 = vld [vmem:[%s166 + $0xa] sm:$0x1]
        %v857 = vld [vmem:[%s166 + $0x32] sm:$0x1]
        %v858 = vld [vmem:[%s166 + $0x5a] sm:$0x1]
        %v859 = vld [vmem:[%s166 + $0x82] sm:$0x1]
        %v860 = vld [vmem:[%s166 + $0xaa] sm:$0x1]
        %v861 = vld [vmem:[%s166 + $0xd2] sm:$0x1]
        %v862 = vld [vmem:[%s166 + $0xfa] sm:$0x1]
        %v863 = vld [vmem:[%s166 + $0x122] sm:$0x1]
        %v872 = vrot.slane %v857, 7
        %v873 = vsel %vm224, %v872, %v856
        %v874 = vrot.slane %v858, 6
        %v875 = vsel %vm227, %v874, %v873
        %v876 = vrot.slane %v859, 5
        %v877 = vsel %vm230, %v876, %v875
        %v878 = vrot.slane %v860, 4
        %v879 = vsel %vm233, %v878, %v877
        %v880 = vrot.slane %v861, 3
        %v881 = vsel %vm236, %v880, %v879
        %v882 = vrot.slane %v862, 2
        %v883 = vsel %vm239, %v882, %v881
        %v884 = vrot.slane %v863, 1
        %v885 = vsel %vm242, %v884, %v883
        %886 = vrot.lane.b32.xlu0 %v885, 2
        %v887 = vpop.permute.xlu0 %886
        %v889 = vmul.f32 %v594, %v887
        %v890 = vmul.f32 %v598, %v887
        %v891 = vmul.f32 %v602, %v887
        %v892 = vmul.f32 %v606, %v887
        %897 = vrot.lane.b32.xlu0 %v889, 126
        %v898 = vpop.permute.xlu0 %897
        %899 = vrot.lane.b32.xlu0 %v890, 126
        %v900 = vpop.permute.xlu0 %899
        %901 = vrot.lane.b32.xlu0 %v891, 126
        %v902 = vpop.permute.xlu0 %901
        %903 = vrot.lane.b32.xlu0 %v892, 126
        %v904 = vpop.permute.xlu0 %903
        %v905 = vsel %vm794, %v898, %v900
        %v906 = vsel %vm794, %v902, %v904
        %v909 = vadd.f32 %v854, %v905
        %v910 = vadd.f32 %v855, %v906
        %v911 = vld [vmem:[%s166 + $0xb] sm:$0x1]
        %v912 = vld [vmem:[%s166 + $0x33] sm:$0x1]
        %v913 = vld [vmem:[%s166 + $0x5b] sm:$0x1]
        %v914 = vld [vmem:[%s166 + $0x83] sm:$0x1]
        %v915 = vld [vmem:[%s166 + $0xab] sm:$0x1]
        %v916 = vld [vmem:[%s166 + $0xd3] sm:$0x1]
        %v917 = vld [vmem:[%s166 + $0xfb] sm:$0x1]
        %v918 = vld [vmem:[%s166 + $0x123] sm:$0x1]
        %v927 = vrot.slane %v912, 7
        %v928 = vsel %vm224, %v927, %v911
        %v929 = vrot.slane %v913, 6
        %v930 = vsel %vm227, %v929, %v928
        %v931 = vrot.slane %v914, 5
        %v932 = vsel %vm230, %v931, %v930
        %v933 = vrot.slane %v915, 4
        %v934 = vsel %vm233, %v933, %v932
        %v935 = vrot.slane %v916, 3
        %v936 = vsel %vm236, %v935, %v934
        %v937 = vrot.slane %v917, 2
        %v938 = vsel %vm239, %v937, %v936
        %v939 = vrot.slane %v918, 1
        %v940 = vsel %vm242, %v939, %v938
        %941 = vrot.lane.b32.xlu0 %v940, 2
        %v942 = vpop.permute.xlu0 %941
        %v944 = vmul.f32 %v685, %v942
        %v945 = vmul.f32 %v689, %v942
        %v946 = vmul.f32 %v693, %v942
        %v947 = vmul.f32 %v697, %v942
        %952 = vrot.lane.b32.xlu0 %v944, 126
        %v953 = vpop.permute.xlu0 %952
        %954 = vrot.lane.b32.xlu0 %v945, 126
        %v955 = vpop.permute.xlu0 %954
        %956 = vrot.lane.b32.xlu0 %v946, 126
        %v957 = vpop.permute.xlu0 %956
        %958 = vrot.lane.b32.xlu0 %v947, 126
        %v959 = vpop.permute.xlu0 %958
        %v960 = vsel %vm794, %v953, %v955
        %v961 = vsel %vm794, %v957, %v959
        %v964 = vadd.f32 %v909, %v960
        %v965 = vadd.f32 %v910, %v961
        %v966 = vld [vmem:[%s166 + $0xc] sm:$0x1]
        %v967 = vld [vmem:[%s166 + $0x34] sm:$0x1]
        %v968 = vld [vmem:[%s166 + $0x5c] sm:$0x1]
        %v969 = vld [vmem:[%s166 + $0x84] sm:$0x1]
        %v970 = vld [vmem:[%s166 + $0xac] sm:$0x1]
        %v971 = vld [vmem:[%s166 + $0xd4] sm:$0x1]
        %v972 = vld [vmem:[%s166 + $0xfc] sm:$0x1]
        %v973 = vld [vmem:[%s166 + $0x124] sm:$0x1]
        %v982 = vrot.slane %v967, 7
        %v983 = vsel %vm224, %v982, %v966
        %v984 = vrot.slane %v968, 6
        %v985 = vsel %vm227, %v984, %v983
        %v986 = vrot.slane %v969, 5
        %v987 = vsel %vm230, %v986, %v985
        %v988 = vrot.slane %v970, 4
        %v989 = vsel %vm233, %v988, %v987
        %v990 = vrot.slane %v971, 3
        %v991 = vsel %vm236, %v990, %v989
        %v992 = vrot.slane %v972, 2
        %v993 = vsel %vm239, %v992, %v991
        %v994 = vrot.slane %v973, 1
        %v995 = vsel %vm242, %v994, %v993
        %996 = vrot.lane.b32.xlu0 %v995, 18
        %v997 = vpop.permute.xlu0 %996
        %v999 = vmul.f32 %v411, %v997
        %v1000 = vmul.f32 %v415, %v997
        %v1001 = vmul.f32 %v419, %v997
        %v1002 = vmul.f32 %v423, %v997
        %1007 = vrot.lane.b32.xlu0 %v999, 110
        %v1008 = vpop.permute.xlu0 %1007
        %1009 = vrot.lane.b32.xlu0 %v1000, 110
        %v1010 = vpop.permute.xlu0 %1009
        %1011 = vrot.lane.b32.xlu0 %v1001, 110
        %v1012 = vpop.permute.xlu0 %1011
        %1013 = vrot.lane.b32.xlu0 %v1002, 110
        %v1014 = vpop.permute.xlu0 %1013
        %vm1015 = vcmask 900096
        %v1016 = vsel %vm1015, %v1008, %v1010
        %v1017 = vsel %vm1015, %v1012, %v1014
        %v1020 = vadd.f32 %v964, %v1016
        %v1021 = vadd.f32 %v965, %v1017
        %v1022 = vld [vmem:[%s166 + $0xd] sm:$0x1]
        %v1023 = vld [vmem:[%s166 + $0x35] sm:$0x1]
        %v1024 = vld [vmem:[%s166 + $0x5d] sm:$0x1]
        %v1025 = vld [vmem:[%s166 + $0x85] sm:$0x1]
        %v1026 = vld [vmem:[%s166 + $0xad] sm:$0x1]
        %v1027 = vld [vmem:[%s166 + $0xd5] sm:$0x1]
        %v1028 = vld [vmem:[%s166 + $0xfd] sm:$0x1]
        %v1029 = vld [vmem:[%s166 + $0x125] sm:$0x1]
        %v1038 = vrot.slane %v1023, 7
        %v1039 = vsel %vm224, %v1038, %v1022
        %v1040 = vrot.slane %v1024, 6
        %v1041 = vsel %vm227, %v1040, %v1039
        %v1042 = vrot.slane %v1025, 5
        %v1043 = vsel %vm230, %v1042, %v1041
        %v1044 = vrot.slane %v1026, 4
        %v1045 = vsel %vm233, %v1044, %v1043
        %v1046 = vrot.slane %v1027, 3
        %v1047 = vsel %vm236, %v1046, %v1045
        %v1048 = vrot.slane %v1028, 2
        %v1049 = vsel %vm239, %v1048, %v1047
        %v1050 = vrot.slane %v1029, 1
        %v1051 = vsel %vm242, %v1050, %v1049
        %1052 = vrot.lane.b32.xlu0 %v1051, 18
        %v1053 = vpop.permute.xlu0 %1052
        %v1055 = vmul.f32 %v503, %v1053
        %v1056 = vmul.f32 %v507, %v1053
        %v1057 = vmul.f32 %v511, %v1053
        %v1058 = vmul.f32 %v515, %v1053
        %1063 = vrot.lane.b32.xlu0 %v1055, 110
        %v1064 = vpop.permute.xlu0 %1063
        %1065 = vrot.lane.b32.xlu0 %v1056, 110
        %v1066 = vpop.permute.xlu0 %1065
        %1067 = vrot.lane.b32.xlu0 %v1057, 110
        %v1068 = vpop.permute.xlu0 %1067
        %1069 = vrot.lane.b32.xlu0 %v1058, 110
        %v1070 = vpop.permute.xlu0 %1069
        %v1071 = vsel %vm1015, %v1064, %v1066
        %v1072 = vsel %vm1015, %v1068, %v1070
        %v1075 = vadd.f32 %v1020, %v1071
        %v1076 = vadd.f32 %v1021, %v1072
        %v1077 = vld [vmem:[%s166 + $0xe] sm:$0x1]
        %v1078 = vld [vmem:[%s166 + $0x36] sm:$0x1]
        %v1079 = vld [vmem:[%s166 + $0x5e] sm:$0x1]
        %v1080 = vld [vmem:[%s166 + $0x86] sm:$0x1]
        %v1081 = vld [vmem:[%s166 + $0xae] sm:$0x1]
        %v1082 = vld [vmem:[%s166 + $0xd6] sm:$0x1]
        %v1083 = vld [vmem:[%s166 + $0xfe] sm:$0x1]
        %v1084 = vld [vmem:[%s166 + $0x126] sm:$0x1]
        %v1093 = vrot.slane %v1078, 7
        %v1094 = vsel %vm224, %v1093, %v1077
        %v1095 = vrot.slane %v1079, 6
        %v1096 = vsel %vm227, %v1095, %v1094
        %v1097 = vrot.slane %v1080, 5
        %v1098 = vsel %vm230, %v1097, %v1096
        %v1099 = vrot.slane %v1081, 4
        %v1100 = vsel %vm233, %v1099, %v1098
        %v1101 = vrot.slane %v1082, 3
        %v1102 = vsel %vm236, %v1101, %v1100
        %v1103 = vrot.slane %v1083, 2
        %v1104 = vsel %vm239, %v1103, %v1102
        %v1105 = vrot.slane %v1084, 1
        %v1106 = vsel %vm242, %v1105, %v1104
        %1107 = vrot.lane.b32.xlu0 %v1106, 18
        %v1108 = vpop.permute.xlu0 %1107
        %v1110 = vmul.f32 %v594, %v1108
        %v1111 = vmul.f32 %v598, %v1108
        %v1112 = vmul.f32 %v602, %v1108
        %v1113 = vmul.f32 %v606, %v1108
        %1118 = vrot.lane.b32.xlu0 %v1110, 110
        %v1119 = vpop.permute.xlu0 %1118
        %1120 = vrot.lane.b32.xlu0 %v1111, 110
        %v1121 = vpop.permute.xlu0 %1120
        %1122 = vrot.lane.b32.xlu0 %v1112, 110
        %v1123 = vpop.permute.xlu0 %1122
        %1124 = vrot.lane.b32.xlu0 %v1113, 110
        %v1125 = vpop.permute.xlu0 %1124
        %v1126 = vsel %vm1015, %v1119, %v1121
        %v1127 = vsel %vm1015, %v1123, %v1125
        %v1130 = vadd.f32 %v1075, %v1126
        %v1131 = vadd.f32 %v1076, %v1127
        %v1132 = vld [vmem:[%s166 + $0xf] sm:$0x1]
        %v1133 = vld [vmem:[%s166 + $0x37] sm:$0x1]
        %v1134 = vld [vmem:[%s166 + $0x5f] sm:$0x1]
        %v1135 = vld [vmem:[%s166 + $0x87] sm:$0x1]
        %v1136 = vld [vmem:[%s166 + $0xaf] sm:$0x1]
        %v1137 = vld [vmem:[%s166 + $0xd7] sm:$0x1]
        %v1138 = vld [vmem:[%s166 + $0xff] sm:$0x1]
        %v1139 = vld [vmem:[%s166 + $0x127] sm:$0x1]
        %v1148 = vrot.slane %v1133, 7
        %v1149 = vsel %vm224, %v1148, %v1132
        %v1150 = vrot.slane %v1134, 6
        %v1151 = vsel %vm227, %v1150, %v1149
        %v1152 = vrot.slane %v1135, 5
        %v1153 = vsel %vm230, %v1152, %v1151
        %v1154 = vrot.slane %v1136, 4
        %v1155 = vsel %vm233, %v1154, %v1153
        %v1156 = vrot.slane %v1137, 3
        %v1157 = vsel %vm236, %v1156, %v1155
        %v1158 = vrot.slane %v1138, 2
        %v1159 = vsel %vm239, %v1158, %v1157
        %v1160 = vrot.slane %v1139, 1
        %v1161 = vsel %vm242, %v1160, %v1159
        %1162 = vrot.lane.b32.xlu0 %v1161, 18
        %v1163 = vpop.permute.xlu0 %1162
        %v1165 = vmul.f32 %v685, %v1163
        %v1166 = vmul.f32 %v689, %v1163
        %v1167 = vmul.f32 %v693, %v1163
        %v1168 = vmul.f32 %v697, %v1163
        %1173 = vrot.lane.b32.xlu0 %v1165, 110
        %v1174 = vpop.permute.xlu0 %1173
        %1175 = vrot.lane.b32.xlu0 %v1166, 110
        %v1176 = vpop.permute.xlu0 %1175
        %1177 = vrot.lane.b32.xlu0 %v1167, 110
        %v1178 = vpop.permute.xlu0 %1177
        %1179 = vrot.lane.b32.xlu0 %v1168, 110
        %v1180 = vpop.permute.xlu0 %1179
        %v1181 = vsel %vm1015, %v1174, %v1176
        %v1182 = vsel %vm1015, %v1178, %v1180
        %v1185 = vadd.f32 %v1130, %v1181
        %v1186 = vadd.f32 %v1131, %v1182
        %v1187 = vld [vmem:[%s166 + $0x10] sm:$0x1]
        %v1188 = vld [vmem:[%s166 + $0x38] sm:$0x1]
        %v1189 = vld [vmem:[%s166 + $0x60] sm:$0x1]
        %v1190 = vld [vmem:[%s166 + $0x88] sm:$0x1]
        %v1191 = vld [vmem:[%s166 + $0xb0] sm:$0x1]
        %v1192 = vld [vmem:[%s166 + $0xd8] sm:$0x1]
        %v1193 = vld [vmem:[%s166 + $0x100] sm:$0x1]
        %v1194 = vld [vmem:[%s166 + $0x128] sm:$0x1]
        %v1203 = vrot.slane %v1188, 7
        %v1204 = vsel %vm224, %v1203, %v1187
        %v1205 = vrot.slane %v1189, 6
        %v1206 = vsel %vm227, %v1205, %v1204
        %v1207 = vrot.slane %v1190, 5
        %v1208 = vsel %vm230, %v1207, %v1206
        %v1209 = vrot.slane %v1191, 4
        %v1210 = vsel %vm233, %v1209, %v1208
        %v1211 = vrot.slane %v1192, 3
        %v1212 = vsel %vm236, %v1211, %v1210
        %v1213 = vrot.slane %v1193, 2
        %v1214 = vsel %vm239, %v1213, %v1212
        %v1215 = vrot.slane %v1194, 1
        %v1216 = vsel %vm242, %v1215, %v1214
        %1217 = vrot.lane.b32.xlu0 %v1216, 19
        %v1218 = vpop.permute.xlu0 %1217
        %v1220 = vmul.f32 %v411, %v1218
        %v1221 = vmul.f32 %v415, %v1218
        %v1222 = vmul.f32 %v419, %v1218
        %v1223 = vmul.f32 %v423, %v1218
        %1228 = vrot.lane.b32.xlu0 %v1220, 109
        %v1229 = vpop.permute.xlu0 %1228
        %1230 = vrot.lane.b32.xlu0 %v1221, 109
        %v1231 = vpop.permute.xlu0 %1230
        %1232 = vrot.lane.b32.xlu0 %v1222, 109
        %v1233 = vpop.permute.xlu0 %1232
        %1234 = vrot.lane.b32.xlu0 %v1223, 109
        %v1235 = vpop.permute.xlu0 %1234
        %vm1236 = vcmask 891904
        %v1237 = vsel %vm1236, %v1229, %v1231
        %v1238 = vsel %vm1236, %v1233, %v1235
        %v1241 = vadd.f32 %v1185, %v1237
        %v1242 = vadd.f32 %v1186, %v1238
        %v1243 = vld [vmem:[%s166 + $0x11] sm:$0x1]
        %v1244 = vld [vmem:[%s166 + $0x39] sm:$0x1]
        %v1245 = vld [vmem:[%s166 + $0x61] sm:$0x1]
        %v1246 = vld [vmem:[%s166 + $0x89] sm:$0x1]
        %v1247 = vld [vmem:[%s166 + $0xb1] sm:$0x1]
        %v1248 = vld [vmem:[%s166 + $0xd9] sm:$0x1]
        %v1249 = vld [vmem:[%s166 + $0x101] sm:$0x1]
        %v1250 = vld [vmem:[%s166 + $0x129] sm:$0x1]
        %v1259 = vrot.slane %v1244, 7
        %v1260 = vsel %vm224, %v1259, %v1243
        %v1261 = vrot.slane %v1245, 6
        %v1262 = vsel %vm227, %v1261, %v1260
        %v1263 = vrot.slane %v1246, 5
        %v1264 = vsel %vm230, %v1263, %v1262
        %v1265 = vrot.slane %v1247, 4
        %v1266 = vsel %vm233, %v1265, %v1264
        %v1267 = vrot.slane %v1248, 3
        %v1268 = vsel %vm236, %v1267, %v1266
        %v1269 = vrot.slane %v1249, 2
        %v1270 = vsel %vm239, %v1269, %v1268
        %v1271 = vrot.slane %v1250, 1
        %v1272 = vsel %vm242, %v1271, %v1270
        %1273 = vrot.lane.b32.xlu0 %v1272, 19
        %v1274 = vpop.permute.xlu0 %1273
        %v1276 = vmul.f32 %v503, %v1274
        %v1277 = vmul.f32 %v507, %v1274
        %v1278 = vmul.f32 %v511, %v1274
        %v1279 = vmul.f32 %v515, %v1274
        %1284 = vrot.lane.b32.xlu0 %v1276, 109
        %v1285 = vpop.permute.xlu0 %1284
        %1286 = vrot.lane.b32.xlu0 %v1277, 109
        %v1287 = vpop.permute.xlu0 %1286
        %1288 = vrot.lane.b32.xlu0 %v1278, 109
        %v1289 = vpop.permute.xlu0 %1288
        %1290 = vrot.lane.b32.xlu0 %v1279, 109
        %v1291 = vpop.permute.xlu0 %1290
        %v1292 = vsel %vm1236, %v1285, %v1287
        %v1293 = vsel %vm1236, %v1289, %v1291
        %v1296 = vadd.f32 %v1241, %v1292
        %v1297 = vadd.f32 %v1242, %v1293
        %v1298 = vld [vmem:[%s166 + $0x12] sm:$0x1]
        %v1299 = vld [vmem:[%s166 + $0x3a] sm:$0x1]
        %v1300 = vld [vmem:[%s166 + $0x62] sm:$0x1]
        %v1301 = vld [vmem:[%s166 + $0x8a] sm:$0x1]
        %v1302 = vld [vmem:[%s166 + $0xb2] sm:$0x1]
        %v1303 = vld [vmem:[%s166 + $0xda] sm:$0x1]
        %v1304 = vld [vmem:[%s166 + $0x102] sm:$0x1]
        %v1305 = vld [vmem:[%s166 + $0x12a] sm:$0x1]
        %v1314 = vrot.slane %v1299, 7
        %v1315 = vsel %vm224, %v1314, %v1298
        %v1316 = vrot.slane %v1300, 6
        %v1317 = vsel %vm227, %v1316, %v1315
        %v1318 = vrot.slane %v1301, 5
        %v1319 = vsel %vm230, %v1318, %v1317
        %v1320 = vrot.slane %v1302, 4
        %v1321 = vsel %vm233, %v1320, %v1319
        %v1322 = vrot.slane %v1303, 3
        %v1323 = vsel %vm236, %v1322, %v1321
        %v1324 = vrot.slane %v1304, 2
        %v1325 = vsel %vm239, %v1324, %v1323
        %v1326 = vrot.slane %v1305, 1
        %v1327 = vsel %vm242, %v1326, %v1325
        %1328 = vrot.lane.b32.xlu0 %v1327, 19
        %v1329 = vpop.permute.xlu0 %1328
        %v1331 = vmul.f32 %v594, %v1329
        %v1332 = vmul.f32 %v598, %v1329
        %v1333 = vmul.f32 %v602, %v1329
        %v1334 = vmul.f32 %v606, %v1329
        %1339 = vrot.lane.b32.xlu0 %v1331, 109
        %v1340 = vpop.permute.xlu0 %1339
        %1341 = vrot.lane.b32.xlu0 %v1332, 109
        %v1342 = vpop.permute.xlu0 %1341
        %1343 = vrot.lane.b32.xlu0 %v1333, 109
        %v1344 = vpop.permute.xlu0 %1343
        %1345 = vrot.lane.b32.xlu0 %v1334, 109
        %v1346 = vpop.permute.xlu0 %1345
        %v1347 = vsel %vm1236, %v1340, %v1342
        %v1348 = vsel %vm1236, %v1344, %v1346
        %v1351 = vadd.f32 %v1296, %v1347
        %v1352 = vadd.f32 %v1297, %v1348
        %v1353 = vld [vmem:[%s166 + $0x13] sm:$0x1]
        %v1354 = vld [vmem:[%s166 + $0x3b] sm:$0x1]
        %v1355 = vld [vmem:[%s166 + $0x63] sm:$0x1]
        %v1356 = vld [vmem:[%s166 + $0x8b] sm:$0x1]
        %v1357 = vld [vmem:[%s166 + $0xb3] sm:$0x1]
        %v1358 = vld [vmem:[%s166 + $0xdb] sm:$0x1]
        %v1359 = vld [vmem:[%s166 + $0x103] sm:$0x1]
        %v1360 = vld [vmem:[%s166 + $0x12b] sm:$0x1]
        %v1369 = vrot.slane %v1354, 7
        %v1370 = vsel %vm224, %v1369, %v1353
        %v1371 = vrot.slane %v1355, 6
        %v1372 = vsel %vm227, %v1371, %v1370
        %v1373 = vrot.slane %v1356, 5
        %v1374 = vsel %vm230, %v1373, %v1372
        %v1375 = vrot.slane %v1357, 4
        %v1376 = vsel %vm233, %v1375, %v1374
        %v1377 = vrot.slane %v1358, 3
        %v1378 = vsel %vm236, %v1377, %v1376
        %v1379 = vrot.slane %v1359, 2
        %v1380 = vsel %vm239, %v1379, %v1378
        %v1381 = vrot.slane %v1360, 1
        %v1382 = vsel %vm242, %v1381, %v1380
        %1383 = vrot.lane.b32.xlu0 %v1382, 19
        %v1384 = vpop.permute.xlu0 %1383
        %v1386 = vmul.f32 %v685, %v1384
        %v1387 = vmul.f32 %v689, %v1384
        %v1388 = vmul.f32 %v693, %v1384
        %v1389 = vmul.f32 %v697, %v1384
        %1394 = vrot.lane.b32.xlu0 %v1386, 109
        %v1395 = vpop.permute.xlu0 %1394
        %1396 = vrot.lane.b32.xlu0 %v1387, 109
        %v1397 = vpop.permute.xlu0 %1396
        %1398 = vrot.lane.b32.xlu0 %v1388, 109
        %v1399 = vpop.permute.xlu0 %1398
        %1400 = vrot.lane.b32.xlu0 %v1389, 109
        %v1401 = vpop.permute.xlu0 %1400
        %v1402 = vsel %vm1236, %v1395, %v1397
        %v1403 = vsel %vm1236, %v1399, %v1401
        %v1406 = vadd.f32 %v1351, %v1402
        %v1407 = vadd.f32 %v1352, %v1403
        %v1408 = vld [vmem:[%s166 + $0x14] sm:$0x1]
        %v1409 = vld [vmem:[%s166 + $0x3c] sm:$0x1]
        %v1410 = vld [vmem:[%s166 + $0x64] sm:$0x1]
        %v1411 = vld [vmem:[%s166 + $0x8c] sm:$0x1]
        %v1412 = vld [vmem:[%s166 + $0xb4] sm:$0x1]
        %v1413 = vld [vmem:[%s166 + $0xdc] sm:$0x1]
        %v1414 = vld [vmem:[%s166 + $0x104] sm:$0x1]
        %v1415 = vld [vmem:[%s166 + $0x12c] sm:$0x1]
        %v1424 = vrot.slane %v1409, 7
        %v1425 = vsel %vm224, %v1424, %v1408
        %v1426 = vrot.slane %v1410, 6
        %v1427 = vsel %vm227, %v1426, %v1425
        %v1428 = vrot.slane %v1411, 5
        %v1429 = vsel %vm230, %v1428, %v1427
        %v1430 = vrot.slane %v1412, 4
        %v1431 = vsel %vm233, %v1430, %v1429
        %v1432 = vrot.slane %v1413, 3
        %v1433 = vsel %vm236, %v1432, %v1431
        %v1434 = vrot.slane %v1414, 2
        %v1435 = vsel %vm239, %v1434, %v1433
        %v1436 = vrot.slane %v1415, 1
        %v1437 = vsel %vm242, %v1436, %v1435
        %1438 = vrot.lane.b32.xlu0 %v1437, 20
        %v1439 = vpop.permute.xlu0 %1438
        %v1441 = vmul.f32 %v411, %v1439
        %v1442 = vmul.f32 %v415, %v1439
        %v1443 = vmul.f32 %v419, %v1439
        %v1444 = vmul.f32 %v423, %v1439
        %1449 = vrot.lane.b32.xlu0 %v1441, 108
        %v1450 = vpop.permute.xlu0 %1449
        %1451 = vrot.lane.b32.xlu0 %v1442, 108
        %v1452 = vpop.permute.xlu0 %1451
        %1453 = vrot.lane.b32.xlu0 %v1443, 108
        %v1454 = vpop.permute.xlu0 %1453
        %1455 = vrot.lane.b32.xlu0 %v1444, 108
        %v1456 = vpop.permute.xlu0 %1455
        %vm1457 = vcmask 883712
        %v1458 = vsel %vm1457, %v1450, %v1452
        %v1459 = vsel %vm1457, %v1454, %v1456
        %v1462 = vadd.f32 %v1406, %v1458
        %v1463 = vadd.f32 %v1407, %v1459
        %v1464 = vld [vmem:[%s166 + $0x15] sm:$0x1]
        %v1465 = vld [vmem:[%s166 + $0x3d] sm:$0x1]
        %v1466 = vld [vmem:[%s166 + $0x65] sm:$0x1]
        %v1467 = vld [vmem:[%s166 + $0x8d] sm:$0x1]
        %v1468 = vld [vmem:[%s166 + $0xb5] sm:$0x1]
        %v1469 = vld [vmem:[%s166 + $0xdd] sm:$0x1]
        %v1470 = vld [vmem:[%s166 + $0x105] sm:$0x1]
        %v1471 = vld [vmem:[%s166 + $0x12d] sm:$0x1]
        %v1480 = vrot.slane %v1465, 7
        %v1481 = vsel %vm224, %v1480, %v1464
        %v1482 = vrot.slane %v1466, 6
        %v1483 = vsel %vm227, %v1482, %v1481
        %v1484 = vrot.slane %v1467, 5
        %v1485 = vsel %vm230, %v1484, %v1483
        %v1486 = vrot.slane %v1468, 4
        %v1487 = vsel %vm233, %v1486, %v1485
        %v1488 = vrot.slane %v1469, 3
        %v1489 = vsel %vm236, %v1488, %v1487
        %v1490 = vrot.slane %v1470, 2
        %v1491 = vsel %vm239, %v1490, %v1489
        %v1492 = vrot.slane %v1471, 1
        %v1493 = vsel %vm242, %v1492, %v1491
        %1494 = vrot.lane.b32.xlu0 %v1493, 20
        %v1495 = vpop.permute.xlu0 %1494
        %v1497 = vmul.f32 %v503, %v1495
        %v1498 = vmul.f32 %v507, %v1495
        %v1499 = vmul.f32 %v511, %v1495
        %v1500 = vmul.f32 %v515, %v1495
        %1505 = vrot.lane.b32.xlu0 %v1497, 108
        %v1506 = vpop.permute.xlu0 %1505
        %1507 = vrot.lane.b32.xlu0 %v1498, 108
        %v1508 = vpop.permute.xlu0 %1507
        %1509 = vrot.lane.b32.xlu0 %v1499, 108
        %v1510 = vpop.permute.xlu0 %1509
        %1511 = vrot.lane.b32.xlu0 %v1500, 108
        %v1512 = vpop.permute.xlu0 %1511
        %v1513 = vsel %vm1457, %v1506, %v1508
        %v1514 = vsel %vm1457, %v1510, %v1512
        %v1517 = vadd.f32 %v1462, %v1513
        %v1518 = vadd.f32 %v1463, %v1514
        %v1519 = vld [vmem:[%s166 + $0x16] sm:$0x1]
        %v1520 = vld [vmem:[%s166 + $0x3e] sm:$0x1]
        %v1521 = vld [vmem:[%s166 + $0x66] sm:$0x1]
        %v1522 = vld [vmem:[%s166 + $0x8e] sm:$0x1]
        %v1523 = vld [vmem:[%s166 + $0xb6] sm:$0x1]
        %v1524 = vld [vmem:[%s166 + $0xde] sm:$0x1]
        %v1525 = vld [vmem:[%s166 + $0x106] sm:$0x1]
        %v1526 = vld [vmem:[%s166 + $0x12e] sm:$0x1]
        %v1535 = vrot.slane %v1520, 7
        %v1536 = vsel %vm224, %v1535, %v1519
        %v1537 = vrot.slane %v1521, 6
        %v1538 = vsel %vm227, %v1537, %v1536
        %v1539 = vrot.slane %v1522, 5
        %v1540 = vsel %vm230, %v1539, %v1538
        %v1541 = vrot.slane %v1523, 4
        %v1542 = vsel %vm233, %v1541, %v1540
        %v1543 = vrot.slane %v1524, 3
        %v1544 = vsel %vm236, %v1543, %v1542
        %v1545 = vrot.slane %v1525, 2
        %v1546 = vsel %vm239, %v1545, %v1544
        %v1547 = vrot.slane %v1526, 1
        %v1548 = vsel %vm242, %v1547, %v1546
        %1549 = vrot.lane.b32.xlu0 %v1548, 20
        %v1550 = vpop.permute.xlu0 %1549
        %v1552 = vmul.f32 %v594, %v1550
        %v1553 = vmul.f32 %v598, %v1550
        %v1554 = vmul.f32 %v602, %v1550
        %v1555 = vmul.f32 %v606, %v1550
        %1560 = vrot.lane.b32.xlu0 %v1552, 108
        %v1561 = vpop.permute.xlu0 %1560
        %1562 = vrot.lane.b32.xlu0 %v1553, 108
        %v1563 = vpop.permute.xlu0 %1562
        %1564 = vrot.lane.b32.xlu0 %v1554, 108
        %v1565 = vpop.permute.xlu0 %1564
        %1566 = vrot.lane.b32.xlu0 %v1555, 108
        %v1567 = vpop.permute.xlu0 %1566
        %v1568 = vsel %vm1457, %v1561, %v1563
        %v1569 = vsel %vm1457, %v1565, %v1567
        %v1572 = vadd.f32 %v1517, %v1568
        %v1573 = vadd.f32 %v1518, %v1569
        %v1574 = vld [vmem:[%s166 + $0x17] sm:$0x1]
        %v1575 = vld [vmem:[%s166 + $0x3f] sm:$0x1]
        %v1576 = vld [vmem:[%s166 + $0x67] sm:$0x1]
        %v1577 = vld [vmem:[%s166 + $0x8f] sm:$0x1]
        %v1578 = vld [vmem:[%s166 + $0xb7] sm:$0x1]
        %v1579 = vld [vmem:[%s166 + $0xdf] sm:$0x1]
        %v1580 = vld [vmem:[%s166 + $0x107] sm:$0x1]
        %v1581 = vld [vmem:[%s166 + $0x12f] sm:$0x1]
        %v1590 = vrot.slane %v1575, 7
        %v1591 = vsel %vm224, %v1590, %v1574
        %v1592 = vrot.slane %v1576, 6
        %v1593 = vsel %vm227, %v1592, %v1591
        %v1594 = vrot.slane %v1577, 5
        %v1595 = vsel %vm230, %v1594, %v1593
        %v1596 = vrot.slane %v1578, 4
        %v1597 = vsel %vm233, %v1596, %v1595
        %v1598 = vrot.slane %v1579, 3
        %v1599 = vsel %vm236, %v1598, %v1597
        %v1600 = vrot.slane %v1580, 2
        %v1601 = vsel %vm239, %v1600, %v1599
        %v1602 = vrot.slane %v1581, 1
        %v1603 = vsel %vm242, %v1602, %v1601
        %1604 = vrot.lane.b32.xlu0 %v1603, 20
        %v1605 = vpop.permute.xlu0 %1604
        %v1607 = vmul.f32 %v685, %v1605
        %v1608 = vmul.f32 %v689, %v1605
        %v1609 = vmul.f32 %v693, %v1605
        %v1610 = vmul.f32 %v697, %v1605
        %1615 = vrot.lane.b32.xlu0 %v1607, 108
        %v1616 = vpop.permute.xlu0 %1615
        %1617 = vrot.lane.b32.xlu0 %v1608, 108
        %v1618 = vpop.permute.xlu0 %1617
        %1619 = vrot.lane.b32.xlu0 %v1609, 108
        %v1620 = vpop.permute.xlu0 %1619
        %1621 = vrot.lane.b32.xlu0 %v1610, 108
        %v1622 = vpop.permute.xlu0 %1621
        %v1623 = vsel %vm1457, %v1616, %v1618
        %v1624 = vsel %vm1457, %v1620, %v1622
        %v1627 = vadd.f32 %v1572, %v1623
        %v1628 = vadd.f32 %v1573, %v1624
        %v1629 = vld [vmem:[%s166 + $0x18] sm:$0x1]
        %v1630 = vld [vmem:[%s166 + $0x40] sm:$0x1]
        %v1631 = vld [vmem:[%s166 + $0x68] sm:$0x1]
        %v1632 = vld [vmem:[%s166 + $0x90] sm:$0x1]
        %v1633 = vld [vmem:[%s166 + $0xb8] sm:$0x1]
        %v1634 = vld [vmem:[%s166 + $0xe0] sm:$0x1]
        %v1635 = vld [vmem:[%s166 + $0x108] sm:$0x1]
        %v1636 = vld [vmem:[%s166 + $0x130] sm:$0x1]
        %v1645 = vrot.slane %v1630, 7
        %v1646 = vsel %vm224, %v1645, %v1629
        %v1647 = vrot.slane %v1631, 6
        %v1648 = vsel %vm227, %v1647, %v1646
        %v1649 = vrot.slane %v1632, 5
        %v1650 = vsel %vm230, %v1649, %v1648
        %v1651 = vrot.slane %v1633, 4
        %v1652 = vsel %vm233, %v1651, %v1650
        %v1653 = vrot.slane %v1634, 3
        %v1654 = vsel %vm236, %v1653, %v1652
        %v1655 = vrot.slane %v1635, 2
        %v1656 = vsel %vm239, %v1655, %v1654
        %v1657 = vrot.slane %v1636, 1
        %v1658 = vsel %vm242, %v1657, %v1656
        %1659 = vrot.lane.b32.xlu0 %v1658, 36
        %v1660 = vpop.permute.xlu0 %1659
        %v1662 = vmul.f32 %v411, %v1660
        %v1663 = vmul.f32 %v415, %v1660
        %v1664 = vmul.f32 %v419, %v1660
        %v1665 = vmul.f32 %v423, %v1660
        %1670 = vrot.lane.b32.xlu0 %v1662, 92
        %v1671 = vpop.permute.xlu0 %1670
        %1672 = vrot.lane.b32.xlu0 %v1663, 92
        %v1673 = vpop.permute.xlu0 %1672
        %1674 = vrot.lane.b32.xlu0 %v1664, 92
        %v1675 = vpop.permute.xlu0 %1674
        %1676 = vrot.lane.b32.xlu0 %v1665, 92
        %v1677 = vpop.permute.xlu0 %1676
        %vm1678 = vcmask 752640
        %v1679 = vsel %vm1678, %v1671, %v1673
        %v1680 = vsel %vm1678, %v1675, %v1677
        %v1683 = vadd.f32 %v1627, %v1679
        %v1684 = vadd.f32 %v1628, %v1680
        %v1685 = vld [vmem:[%s166 + $0x19] sm:$0x1]
        %v1686 = vld [vmem:[%s166 + $0x41] sm:$0x1]
        %v1687 = vld [vmem:[%s166 + $0x69] sm:$0x1]
        %v1688 = vld [vmem:[%s166 + $0x91] sm:$0x1]
        %v1689 = vld [vmem:[%s166 + $0xb9] sm:$0x1]
        %v1690 = vld [vmem:[%s166 + $0xe1] sm:$0x1]
        %v1691 = vld [vmem:[%s166 + $0x109] sm:$0x1]
        %v1692 = vld [vmem:[%s166 + $0x131] sm:$0x1]
        %v1701 = vrot.slane %v1686, 7
        %v1702 = vsel %vm224, %v1701, %v1685
        %v1703 = vrot.slane %v1687, 6
        %v1704 = vsel %vm227, %v1703, %v1702
        %v1705 = vrot.slane %v1688, 5
        %v1706 = vsel %vm230, %v1705, %v1704
        %v1707 = vrot.slane %v1689, 4
        %v1708 = vsel %vm233, %v1707, %v1706
        %v1709 = vrot.slane %v1690, 3
        %v1710 = vsel %vm236, %v1709, %v1708
        %v1711 = vrot.slane %v1691, 2
        %v1712 = vsel %vm239, %v1711, %v1710
        %v1713 = vrot.slane %v1692, 1
        %v1714 = vsel %vm242, %v1713, %v1712
        %1715 = vrot.lane.b32.xlu0 %v1714, 36
        %v1716 = vpop.permute.xlu0 %1715
        %v1718 = vmul.f32 %v503, %v1716
        %v1719 = vmul.f32 %v507, %v1716
        %v1720 = vmul.f32 %v511, %v1716
        %v1721 = vmul.f32 %v515, %v1716
        %1726 = vrot.lane.b32.xlu0 %v1718, 92
        %v1727 = vpop.permute.xlu0 %1726
        %1728 = vrot.lane.b32.xlu0 %v1719, 92
        %v1729 = vpop.permute.xlu0 %1728
        %1730 = vrot.lane.b32.xlu0 %v1720, 92
        %v1731 = vpop.permute.xlu0 %1730
        %1732 = vrot.lane.b32.xlu0 %v1721, 92
        %v1733 = vpop.permute.xlu0 %1732
        %v1734 = vsel %vm1678, %v1727, %v1729
        %v1735 = vsel %vm1678, %v1731, %v1733
        %v1738 = vadd.f32 %v1683, %v1734
        %v1739 = vadd.f32 %v1684, %v1735
        %v1740 = vld [vmem:[%s166 + $0x1a] sm:$0x1]
        %v1741 = vld [vmem:[%s166 + $0x42] sm:$0x1]
        %v1742 = vld [vmem:[%s166 + $0x6a] sm:$0x1]
        %v1743 = vld [vmem:[%s166 + $0x92] sm:$0x1]
        %v1744 = vld [vmem:[%s166 + $0xba] sm:$0x1]
        %v1745 = vld [vmem:[%s166 + $0xe2] sm:$0x1]
        %v1746 = vld [vmem:[%s166 + $0x10a] sm:$0x1]
        %v1747 = vld [vmem:[%s166 + $0x132] sm:$0x1]
        %v1756 = vrot.slane %v1741, 7
        %v1757 = vsel %vm224, %v1756, %v1740
        %v1758 = vrot.slane %v1742, 6
        %v1759 = vsel %vm227, %v1758, %v1757
        %v1760 = vrot.slane %v1743, 5
        %v1761 = vsel %vm230, %v1760, %v1759
        %v1762 = vrot.slane %v1744, 4
        %v1763 = vsel %vm233, %v1762, %v1761
        %v1764 = vrot.slane %v1745, 3
        %v1765 = vsel %vm236, %v1764, %v1763
        %v1766 = vrot.slane %v1746, 2
        %v1767 = vsel %vm239, %v1766, %v1765
        %v1768 = vrot.slane %v1747, 1
        %v1769 = vsel %vm242, %v1768, %v1767
        %1770 = vrot.lane.b32.xlu0 %v1769, 36
        %v1771 = vpop.permute.xlu0 %1770
        %v1773 = vmul.f32 %v594, %v1771
        %v1774 = vmul.f32 %v598, %v1771
        %v1775 = vmul.f32 %v602, %v1771
        %v1776 = vmul.f32 %v606, %v1771
        %1781 = vrot.lane.b32.xlu0 %v1773, 92
        %v1782 = vpop.permute.xlu0 %1781
        %1783 = vrot.lane.b32.xlu0 %v1774, 92
        %v1784 = vpop.permute.xlu0 %1783
        %1785 = vrot.lane.b32.xlu0 %v1775, 92
        %v1786 = vpop.permute.xlu0 %1785
        %1787 = vrot.lane.b32.xlu0 %v1776, 92
        %v1788 = vpop.permute.xlu0 %1787
        %v1789 = vsel %vm1678, %v1782, %v1784
        %v1790 = vsel %vm1678, %v1786, %v1788
        %v1793 = vadd.f32 %v1738, %v1789
        %v1794 = vadd.f32 %v1739, %v1790
        %v1795 = vld [vmem:[%s166 + $0x1b] sm:$0x1]
        %v1796 = vld [vmem:[%s166 + $0x43] sm:$0x1]
        %v1797 = vld [vmem:[%s166 + $0x6b] sm:$0x1]
        %v1798 = vld [vmem:[%s166 + $0x93] sm:$0x1]
        %v1799 = vld [vmem:[%s166 + $0xbb] sm:$0x1]
        %v1800 = vld [vmem:[%s166 + $0xe3] sm:$0x1]
        %v1801 = vld [vmem:[%s166 + $0x10b] sm:$0x1]
        %v1802 = vld [vmem:[%s166 + $0x133] sm:$0x1]
        %v1811 = vrot.slane %v1796, 7
        %v1812 = vsel %vm224, %v1811, %v1795
        %v1813 = vrot.slane %v1797, 6
        %v1814 = vsel %vm227, %v1813, %v1812
        %v1815 = vrot.slane %v1798, 5
        %v1816 = vsel %vm230, %v1815, %v1814
        %v1817 = vrot.slane %v1799, 4
        %v1818 = vsel %vm233, %v1817, %v1816
        %v1819 = vrot.slane %v1800, 3
        %v1820 = vsel %vm236, %v1819, %v1818
        %v1821 = vrot.slane %v1801, 2
        %v1822 = vsel %vm239, %v1821, %v1820
        %v1823 = vrot.slane %v1802, 1
        %v1824 = vsel %vm242, %v1823, %v1822
        %1825 = vrot.lane.b32.xlu0 %v1824, 36
        %v1826 = vpop.permute.xlu0 %1825
        %v1828 = vmul.f32 %v685, %v1826
        %v1829 = vmul.f32 %v689, %v1826
        %v1830 = vmul.f32 %v693, %v1826
        %v1831 = vmul.f32 %v697, %v1826
        %1836 = vrot.lane.b32.xlu0 %v1828, 92
        %v1837 = vpop.permute.xlu0 %1836
        %1838 = vrot.lane.b32.xlu0 %v1829, 92
        %v1839 = vpop.permute.xlu0 %1838
        %1840 = vrot.lane.b32.xlu0 %v1830, 92
        %v1841 = vpop.permute.xlu0 %1840
        %1842 = vrot.lane.b32.xlu0 %v1831, 92
        %v1843 = vpop.permute.xlu0 %1842
        %v1844 = vsel %vm1678, %v1837, %v1839
        %v1845 = vsel %vm1678, %v1841, %v1843
        %v1848 = vadd.f32 %v1793, %v1844
        %v1849 = vadd.f32 %v1794, %v1845
        %v1850 = vld [vmem:[%s166 + $0x1c] sm:$0x1]
        %v1851 = vld [vmem:[%s166 + $0x44] sm:$0x1]
        %v1852 = vld [vmem:[%s166 + $0x6c] sm:$0x1]
        %v1853 = vld [vmem:[%s166 + $0x94] sm:$0x1]
        %v1854 = vld [vmem:[%s166 + $0xbc] sm:$0x1]
        %v1855 = vld [vmem:[%s166 + $0xe4] sm:$0x1]
        %v1856 = vld [vmem:[%s166 + $0x10c] sm:$0x1]
        %v1857 = vld [vmem:[%s166 + $0x134] sm:$0x1]
        %v1866 = vrot.slane %v1851, 7
        %v1867 = vsel %vm224, %v1866, %v1850
        %v1868 = vrot.slane %v1852, 6
        %v1869 = vsel %vm227, %v1868, %v1867
        %v1870 = vrot.slane %v1853, 5
        %v1871 = vsel %vm230, %v1870, %v1869
        %v1872 = vrot.slane %v1854, 4
        %v1873 = vsel %vm233, %v1872, %v1871
        %v1874 = vrot.slane %v1855, 3
        %v1875 = vsel %vm236, %v1874, %v1873
        %v1876 = vrot.slane %v1856, 2
        %v1877 = vsel %vm239, %v1876, %v1875
        %v1878 = vrot.slane %v1857, 1
        %v1879 = vsel %vm242, %v1878, %v1877
        %1880 = vrot.lane.b32.xlu0 %v1879, 37
        %v1881 = vpop.permute.xlu0 %1880
        %v1883 = vmul.f32 %v411, %v1881
        %v1884 = vmul.f32 %v415, %v1881
        %v1885 = vmul.f32 %v419, %v1881
        %v1886 = vmul.f32 %v423, %v1881
        %1891 = vrot.lane.b32.xlu0 %v1883, 91
        %v1892 = vpop.permute.xlu0 %1891
        %1893 = vrot.lane.b32.xlu0 %v1884, 91
        %v1894 = vpop.permute.xlu0 %1893
        %1895 = vrot.lane.b32.xlu0 %v1885, 91
        %v1896 = vpop.permute.xlu0 %1895
        %1897 = vrot.lane.b32.xlu0 %v1886, 91
        %v1898 = vpop.permute.xlu0 %1897
        %vm1899 = vcmask 744448
        %v1900 = vsel %vm1899, %v1892, %v1894
        %v1901 = vsel %vm1899, %v1896, %v1898
        %v1904 = vadd.f32 %v1848, %v1900
        %v1905 = vadd.f32 %v1849, %v1901
        %v1906 = vld [vmem:[%s166 + $0x1d] sm:$0x1]
        %v1907 = vld [vmem:[%s166 + $0x45] sm:$0x1]
        %v1908 = vld [vmem:[%s166 + $0x6d] sm:$0x1]
        %v1909 = vld [vmem:[%s166 + $0x95] sm:$0x1]
        %v1910 = vld [vmem:[%s166 + $0xbd] sm:$0x1]
        %v1911 = vld [vmem:[%s166 + $0xe5] sm:$0x1]
        %v1912 = vld [vmem:[%s166 + $0x10d] sm:$0x1]
        %v1913 = vld [vmem:[%s166 + $0x135] sm:$0x1]
        %v1922 = vrot.slane %v1907, 7
        %v1923 = vsel %vm224, %v1922, %v1906
        %v1924 = vrot.slane %v1908, 6
        %v1925 = vsel %vm227, %v1924, %v1923
        %v1926 = vrot.slane %v1909, 5
        %v1927 = vsel %vm230, %v1926, %v1925
        %v1928 = vrot.slane %v1910, 4
        %v1929 = vsel %vm233, %v1928, %v1927
        %v1930 = vrot.slane %v1911, 3
        %v1931 = vsel %vm236, %v1930, %v1929
        %v1932 = vrot.slane %v1912, 2
        %v1933 = vsel %vm239, %v1932, %v1931
        %v1934 = vrot.slane %v1913, 1
        %v1935 = vsel %vm242, %v1934, %v1933
        %1936 = vrot.lane.b32.xlu0 %v1935, 37
        %v1937 = vpop.permute.xlu0 %1936
        %v1939 = vmul.f32 %v503, %v1937
        %v1940 = vmul.f32 %v507, %v1937
        %v1941 = vmul.f32 %v511, %v1937
        %v1942 = vmul.f32 %v515, %v1937
        %1947 = vrot.lane.b32.xlu0 %v1939, 91
        %v1948 = vpop.permute.xlu0 %1947
        %1949 = vrot.lane.b32.xlu0 %v1940, 91
        %v1950 = vpop.permute.xlu0 %1949
        %1951 = vrot.lane.b32.xlu0 %v1941, 91
        %v1952 = vpop.permute.xlu0 %1951
        %1953 = vrot.lane.b32.xlu0 %v1942, 91
        %v1954 = vpop.permute.xlu0 %1953
        %v1955 = vsel %vm1899, %v1948, %v1950
        %v1956 = vsel %vm1899, %v1952, %v1954
        %v1959 = vadd.f32 %v1904, %v1955
        %v1960 = vadd.f32 %v1905, %v1956
        %v1961 = vld [vmem:[%s166 + $0x1e] sm:$0x1]
        %v1962 = vld [vmem:[%s166 + $0x46] sm:$0x1]
        %v1963 = vld [vmem:[%s166 + $0x6e] sm:$0x1]
        %v1964 = vld [vmem:[%s166 + $0x96] sm:$0x1]
        %v1965 = vld [vmem:[%s166 + $0xbe] sm:$0x1]
        %v1966 = vld [vmem:[%s166 + $0xe6] sm:$0x1]
        %v1967 = vld [vmem:[%s166 + $0x10e] sm:$0x1]
        %v1968 = vld [vmem:[%s166 + $0x136] sm:$0x1]
        %v1977 = vrot.slane %v1962, 7
        %v1978 = vsel %vm224, %v1977, %v1961
        %v1979 = vrot.slane %v1963, 6
        %v1980 = vsel %vm227, %v1979, %v1978
        %v1981 = vrot.slane %v1964, 5
        %v1982 = vsel %vm230, %v1981, %v1980
        %v1983 = vrot.slane %v1965, 4
        %v1984 = vsel %vm233, %v1983, %v1982
        %v1985 = vrot.slane %v1966, 3
        %v1986 = vsel %vm236, %v1985, %v1984
        %v1987 = vrot.slane %v1967, 2
        %v1988 = vsel %vm239, %v1987, %v1986
        %v1989 = vrot.slane %v1968, 1
        %v1990 = vsel %vm242, %v1989, %v1988
        %1991 = vrot.lane.b32.xlu0 %v1990, 37
        %v1992 = vpop.permute.xlu0 %1991
        %v1994 = vmul.f32 %v594, %v1992
        %v1995 = vmul.f32 %v598, %v1992
        %v1996 = vmul.f32 %v602, %v1992
        %v1997 = vmul.f32 %v606, %v1992
        %2002 = vrot.lane.b32.xlu0 %v1994, 91
        %v2003 = vpop.permute.xlu0 %2002
        %2004 = vrot.lane.b32.xlu0 %v1995, 91
        %v2005 = vpop.permute.xlu0 %2004
        %2006 = vrot.lane.b32.xlu0 %v1996, 91
        %v2007 = vpop.permute.xlu0 %2006
        %2008 = vrot.lane.b32.xlu0 %v1997, 91
        %v2009 = vpop.permute.xlu0 %2008
        %v2010 = vsel %vm1899, %v2003, %v2005
        %v2011 = vsel %vm1899, %v2007, %v2009
        %v2014 = vadd.f32 %v1959, %v2010
        %v2015 = vadd.f32 %v1960, %v2011
        %v2016 = vld [vmem:[%s166 + $0x1f] sm:$0x1]
        %v2017 = vld [vmem:[%s166 + $0x47] sm:$0x1]
        %v2018 = vld [vmem:[%s166 + $0x6f] sm:$0x1]
        %v2019 = vld [vmem:[%s166 + $0x97] sm:$0x1]
        %v2020 = vld [vmem:[%s166 + $0xbf] sm:$0x1]
        %v2021 = vld [vmem:[%s166 + $0xe7] sm:$0x1]
        %v2022 = vld [vmem:[%s166 + $0x10f] sm:$0x1]
        %v2023 = vld [vmem:[%s166 + $0x137] sm:$0x1]
        %v2032 = vrot.slane %v2017, 7
        %v2033 = vsel %vm224, %v2032, %v2016
        %v2034 = vrot.slane %v2018, 6
        %v2035 = vsel %vm227, %v2034, %v2033
        %v2036 = vrot.slane %v2019, 5
        %v2037 = vsel %vm230, %v2036, %v2035
        %v2038 = vrot.slane %v2020, 4
        %v2039 = vsel %vm233, %v2038, %v2037
        %v2040 = vrot.slane %v2021, 3
        %v2041 = vsel %vm236, %v2040, %v2039
        %v2042 = vrot.slane %v2022, 2
        %v2043 = vsel %vm239, %v2042, %v2041
        %v2044 = vrot.slane %v2023, 1
        %v2045 = vsel %vm242, %v2044, %v2043
        %2046 = vrot.lane.b32.xlu0 %v2045, 37
        %v2047 = vpop.permute.xlu0 %2046
        %v2049 = vmul.f32 %v685, %v2047
        %v2050 = vmul.f32 %v689, %v2047
        %v2051 = vmul.f32 %v693, %v2047
        %v2052 = vmul.f32 %v697, %v2047
        %2057 = vrot.lane.b32.xlu0 %v2049, 91
        %v2058 = vpop.permute.xlu0 %2057
        %2059 = vrot.lane.b32.xlu0 %v2050, 91
        %v2060 = vpop.permute.xlu0 %2059
        %2061 = vrot.lane.b32.xlu0 %v2051, 91
        %v2062 = vpop.permute.xlu0 %2061
        %2063 = vrot.lane.b32.xlu0 %v2052, 91
        %v2064 = vpop.permute.xlu0 %2063
        %v2065 = vsel %vm1899, %v2058, %v2060
        %v2066 = vsel %vm1899, %v2062, %v2064
        %v2069 = vadd.f32 %v2014, %v2065
        %v2070 = vadd.f32 %v2015, %v2066
        %v2071 = vld [vmem:[%s166 + $0x20] sm:$0x1]
        %v2072 = vld [vmem:[%s166 + $0x48] sm:$0x1]
        %v2073 = vld [vmem:[%s166 + $0x70] sm:$0x1]
        %v2074 = vld [vmem:[%s166 + $0x98] sm:$0x1]
        %v2075 = vld [vmem:[%s166 + $0xc0] sm:$0x1]
        %v2076 = vld [vmem:[%s166 + $0xe8] sm:$0x1]
        %v2077 = vld [vmem:[%s166 + $0x110] sm:$0x1]
        %v2078 = vld [vmem:[%s166 + $0x138] sm:$0x1]
        %v2087 = vrot.slane %v2072, 7
        %v2088 = vsel %vm224, %v2087, %v2071
        %v2089 = vrot.slane %v2073, 6
        %v2090 = vsel %vm227, %v2089, %v2088
        %v2091 = vrot.slane %v2074, 5
        %v2092 = vsel %vm230, %v2091, %v2090
        %v2093 = vrot.slane %v2075, 4
        %v2094 = vsel %vm233, %v2093, %v2092
        %v2095 = vrot.slane %v2076, 3
        %v2096 = vsel %vm236, %v2095, %v2094
        %v2097 = vrot.slane %v2077, 2
        %v2098 = vsel %vm239, %v2097, %v2096
        %v2099 = vrot.slane %v2078, 1
        %v2100 = vsel %vm242, %v2099, %v2098
        %2101 = vrot.lane.b32.xlu0 %v2100, 38
        %v2102 = vpop.permute.xlu0 %2101
        %v2104 = vmul.f32 %v411, %v2102
        %v2105 = vmul.f32 %v415, %v2102
        %v2106 = vmul.f32 %v419, %v2102
        %v2107 = vmul.f32 %v423, %v2102
        %2112 = vrot.lane.b32.xlu0 %v2104, 90
        %v2113 = vpop.permute.xlu0 %2112
        %2114 = vrot.lane.b32.xlu0 %v2105, 90
        %v2115 = vpop.permute.xlu0 %2114
        %2116 = vrot.lane.b32.xlu0 %v2106, 90
        %v2117 = vpop.permute.xlu0 %2116
        %2118 = vrot.lane.b32.xlu0 %v2107, 90
        %v2119 = vpop.permute.xlu0 %2118
        %vm2120 = vcmask 736256
        %v2121 = vsel %vm2120, %v2113, %v2115
        %v2122 = vsel %vm2120, %v2117, %v2119
        %v2125 = vadd.f32 %v2069, %v2121
        %v2126 = vadd.f32 %v2070, %v2122
        %v2127 = vld [vmem:[%s166 + $0x21] sm:$0x1]
        %v2128 = vld [vmem:[%s166 + $0x49] sm:$0x1]
        %v2129 = vld [vmem:[%s166 + $0x71] sm:$0x1]
        %v2130 = vld [vmem:[%s166 + $0x99] sm:$0x1]
        %v2131 = vld [vmem:[%s166 + $0xc1] sm:$0x1]
        %v2132 = vld [vmem:[%s166 + $0xe9] sm:$0x1]
        %v2133 = vld [vmem:[%s166 + $0x111] sm:$0x1]
        %v2134 = vld [vmem:[%s166 + $0x139] sm:$0x1]
        %v2143 = vrot.slane %v2128, 7
        %v2144 = vsel %vm224, %v2143, %v2127
        %v2145 = vrot.slane %v2129, 6
        %v2146 = vsel %vm227, %v2145, %v2144
        %v2147 = vrot.slane %v2130, 5
        %v2148 = vsel %vm230, %v2147, %v2146
        %v2149 = vrot.slane %v2131, 4
        %v2150 = vsel %vm233, %v2149, %v2148
        %v2151 = vrot.slane %v2132, 3
        %v2152 = vsel %vm236, %v2151, %v2150
        %v2153 = vrot.slane %v2133, 2
        %v2154 = vsel %vm239, %v2153, %v2152
        %v2155 = vrot.slane %v2134, 1
        %v2156 = vsel %vm242, %v2155, %v2154
        %2157 = vrot.lane.b32.xlu0 %v2156, 38
        %v2158 = vpop.permute.xlu0 %2157
        %v2160 = vmul.f32 %v503, %v2158
        %v2161 = vmul.f32 %v507, %v2158
        %v2162 = vmul.f32 %v511, %v2158
        %v2163 = vmul.f32 %v515, %v2158
        %2168 = vrot.lane.b32.xlu0 %v2160, 90
        %v2169 = vpop.permute.xlu0 %2168
        %2170 = vrot.lane.b32.xlu0 %v2161, 90
        %v2171 = vpop.permute.xlu0 %2170
        %2172 = vrot.lane.b32.xlu0 %v2162, 90
        %v2173 = vpop.permute.xlu0 %2172
        %2174 = vrot.lane.b32.xlu0 %v2163, 90
        %v2175 = vpop.permute.xlu0 %2174
        %v2176 = vsel %vm2120, %v2169, %v2171
        %v2177 = vsel %vm2120, %v2173, %v2175
        %v2180 = vadd.f32 %v2125, %v2176
        %v2181 = vadd.f32 %v2126, %v2177
        %v2182 = vld [vmem:[%s166 + $0x22] sm:$0x1]
        %v2183 = vld [vmem:[%s166 + $0x4a] sm:$0x1]
        %v2184 = vld [vmem:[%s166 + $0x72] sm:$0x1]
        %v2185 = vld [vmem:[%s166 + $0x9a] sm:$0x1]
        %v2186 = vld [vmem:[%s166 + $0xc2] sm:$0x1]
        %v2187 = vld [vmem:[%s166 + $0xea] sm:$0x1]
        %v2188 = vld [vmem:[%s166 + $0x112] sm:$0x1]
        %v2189 = vld [vmem:[%s166 + $0x13a] sm:$0x1]
        %v2198 = vrot.slane %v2183, 7
        %v2199 = vsel %vm224, %v2198, %v2182
        %v2200 = vrot.slane %v2184, 6
        %v2201 = vsel %vm227, %v2200, %v2199
        %v2202 = vrot.slane %v2185, 5
        %v2203 = vsel %vm230, %v2202, %v2201
        %v2204 = vrot.slane %v2186, 4
        %v2205 = vsel %vm233, %v2204, %v2203
        %v2206 = vrot.slane %v2187, 3
        %v2207 = vsel %vm236, %v2206, %v2205
        %v2208 = vrot.slane %v2188, 2
        %v2209 = vsel %vm239, %v2208, %v2207
        %v2210 = vrot.slane %v2189, 1
        %v2211 = vsel %vm242, %v2210, %v2209
        %2212 = vrot.lane.b32.xlu0 %v2211, 38
        %v2213 = vpop.permute.xlu0 %2212
        %v2215 = vmul.f32 %v594, %v2213
        %v2216 = vmul.f32 %v598, %v2213
        %v2217 = vmul.f32 %v602, %v2213
        %v2218 = vmul.f32 %v606, %v2213
        %2223 = vrot.lane.b32.xlu0 %v2215, 90
        %v2224 = vpop.permute.xlu0 %2223
        %2225 = vrot.lane.b32.xlu0 %v2216, 90
        %v2226 = vpop.permute.xlu0 %2225
        %2227 = vrot.lane.b32.xlu0 %v2217, 90
        %v2228 = vpop.permute.xlu0 %2227
        %2229 = vrot.lane.b32.xlu0 %v2218, 90
        %v2230 = vpop.permute.xlu0 %2229
        %v2231 = vsel %vm2120, %v2224, %v2226
        %v2232 = vsel %vm2120, %v2228, %v2230
        %v2235 = vadd.f32 %v2180, %v2231
        %v2236 = vadd.f32 %v2181, %v2232
        %v2237 = vld [vmem:[%s166 + $0x23] sm:$0x1]
        %v2238 = vld [vmem:[%s166 + $0x4b] sm:$0x1]
        %v2239 = vld [vmem:[%s166 + $0x73] sm:$0x1]
        %v2240 = vld [vmem:[%s166 + $0x9b] sm:$0x1]
        %v2241 = vld [vmem:[%s166 + $0xc3] sm:$0x1]
        %v2242 = vld [vmem:[%s166 + $0xeb] sm:$0x1]
        %v2243 = vld [vmem:[%s166 + $0x113] sm:$0x1]
        %v2244 = vld [vmem:[%s166 + $0x13b] sm:$0x1]
        %v2253 = vrot.slane %v2238, 7
        %v2254 = vsel %vm224, %v2253, %v2237
        %v2255 = vrot.slane %v2239, 6
        %v2256 = vsel %vm227, %v2255, %v2254
        %v2257 = vrot.slane %v2240, 5
        %v2258 = vsel %vm230, %v2257, %v2256
        %v2259 = vrot.slane %v2241, 4
        %v2260 = vsel %vm233, %v2259, %v2258
        %v2261 = vrot.slane %v2242, 3
        %v2262 = vsel %vm236, %v2261, %v2260
        %v2263 = vrot.slane %v2243, 2
        %v2264 = vsel %vm239, %v2263, %v2262
        %v2265 = vrot.slane %v2244, 1
        %v2266 = vsel %vm242, %v2265, %v2264
        %2267 = vrot.lane.b32.xlu0 %v2266, 38
        %v2268 = vpop.permute.xlu0 %2267
        %v2270 = vmul.f32 %v685, %v2268
        %v2271 = vmul.f32 %v689, %v2268
        %v2272 = vmul.f32 %v693, %v2268
        %v2273 = vmul.f32 %v697, %v2268
        %2278 = vrot.lane.b32.xlu0 %v2270, 90
        %v2279 = vpop.permute.xlu0 %2278
        %2280 = vrot.lane.b32.xlu0 %v2271, 90
        %v2281 = vpop.permute.xlu0 %2280
        %2282 = vrot.lane.b32.xlu0 %v2272, 90
        %v2283 = vpop.permute.xlu0 %2282
        %2284 = vrot.lane.b32.xlu0 %v2273, 90
        %v2285 = vpop.permute.xlu0 %2284
        %v2286 = vsel %vm2120, %v2279, %v2281
        %v2287 = vsel %vm2120, %v2283, %v2285
        %v2290 = vadd.f32 %v2235, %v2286
        %v2291 = vadd.f32 %v2236, %v2287
        %vm2292 = vcmp.ge.f32.partialorder %v2290, 0.0
        %vm2293 = vcmp.ge.f32.partialorder %v2291, 0.0
        %v2294 = vmul.f32 %v2290, 0.1
        %v2295 = vmul.f32 %v2291, 0.1
        %v2296 = vsel %vm2292, %v2290, %v2294
        %v2297 = vsel %vm2293, %v2291, %v2295
        %2298 = vst [vmem:[%s190] sm:$0xff] %v2296
        %2299 = vst [vmem:[%s190 + $0x8] sm:$0xff] %v2297
        %s2300 = sand.u32 %s92, 1
        %s2301 = sand.u32 %s92, 1
        %s2302 = smul.addr %s2301, 16
        %s2303 = scalar_lea.vmem [#allocation4], %s2302
        // Predicated region
        $region33: #{_lambda_.1} parent=27 // pred_check
          %p2304 = pneg %p102
        $region34: #{_lambda_.1} parent=27 // pred_check_branch
          %2306 = sbr.rel (%p2304) target = $region36
        $region35: #{_lambda_.1} parent=27 // pred_region
          %s2307 = smul.addr %s21, 3
          %s2308 = sadd.s32 %s20, %s2307
          %s2309 = smul.addr %s2308, 8
          %s2310 = scalar_lea.vmem %s2, %s2309
          // Predicated region
          $region37: #{_lambda_.1} parent=35 // pred_check
            _
          $region38: #{_lambda_.1} parent=35 // pred_check_branch
            %2312 = sbr.rel (0) target = $region40
          $region39: #{_lambda_.1} parent=35 // pred_region
            // Predicated region
            $region41: #{_lambda_.1} parent=39 // pred_check
              _
            $region42: #{_lambda_.1} parent=39 // pred_check_branch
              %2314 = sbr.rel (0) target = $region44
            $region43: #{_lambda_.1} parent=39 // pred_region
              // Predicated region
              $region56: #{_lambda_.1} parent=43 // pred_check
                _
              $region57: #{_lambda_.1} parent=43 // pred_check_branch
                %2331 = sbr.rel (0) target = $region59
              $region58: #{_lambda_.1} parent=43 // pred_region
                loop: start=0, step=1, limit=1
                $region60: #{_lambda_.1} parent=58 // loop_pre_header
                  _
                $region61: #{_lambda_.1} parent=58 // loop_header
                  %s2333 = sphi 0, %s2337
                  %p2334 = scmp.ge.s32.totalorder %s2333, 1
                  %s2338 = sphi %s2303, %s2303
                  %s2339 = sphi %s2310, %s2310
                $region62: #{_lambda_.1} parent=58 // loop_header_branch
                  %2336 = sbr.rel (%p2334) target = $region66
                $region63: #{_lambda_.1} parent=58 // loop_body
                  %v2340 = vld [vmem:[%s2338] sm:$0xff]
                  %2341 = vst [vmem:[%s2339] sm:$0xff] %v2340
                  %v2342 = vld [vmem:[%s2338 + $0x8] sm:$0xff]
                  %2343 = vst [vmem:[%s2339 + $0x18] sm:$0xff] %v2342
                $region64: #{_lambda_.1} parent=58 // loop_footer
                  %s2337 = sadd.s32 1, %s2333
                $region65: #{_lambda_.1} parent=58 // loop_footer_branch
                  %2332 = sbr.rel target = $region61
                $region66: #{_lambda_.1} parent=58 // loop_exit
                  _
              $region59: #{_lambda_.1} parent=43 // pred_fallthru
                _
              // Predicated region
              $region67: #{_lambda_.1} parent=43 // pred_check
                _
              $region68: #{_lambda_.1} parent=43 // pred_check_branch
                %2345 = sbr.rel target = $region70
              $region69: #{_lambda_.1} parent=43 // pred_region
                _
              $region70: #{_lambda_.1} parent=43 // pred_fallthru
                _
            $region44: #{_lambda_.1} parent=39 // pred_fallthru
              _
            // Predicated region
            $region45: #{_lambda_.1} parent=39 // pred_check
              _
            $region46: #{_lambda_.1} parent=39 // pred_check_branch
              %2316 = sbr.rel target = $region48
            $region47: #{_lambda_.1} parent=39 // pred_region
              loop: start=0, step=1, limit=1
              $region49: #{_lambda_.1} parent=47 // loop_pre_header
                _
              $region50: #{_lambda_.1} parent=47 // loop_header
                %s2319 = sphi 0, %s2323
                %p2320 = scmp.ge.s32.totalorder %s2319, 1
                %s2324 = sphi %s2303, %s2303
                %s2325 = sphi %s2310, %s2310
              $region51: #{_lambda_.1} parent=47 // loop_header_branch
                %2322 = sbr.rel (%p2320) target = $region55
              $region52: #{_lambda_.1} parent=47 // loop_body
                %v2326 = vld [vmem:[%s2324] sm:$0xff]
                %2327 = vst [vmem:[%s2325] sm:$0xff] %v2326
                %v2328 = vld [vmem:[%s2324 + $0x8] sm:$0xff]
                %2329 = vst [vmem:[%s2325 + $0x18] sm:$0xff] %v2328
              $region53: #{_lambda_.1} parent=47 // loop_footer
                %s2323 = sadd.s32 1, %s2319
              $region54: #{_lambda_.1} parent=47 // loop_footer_branch
                %2318 = sbr.rel target = $region50
              $region55: #{_lambda_.1} parent=47 // loop_exit
                _
            $region48: #{_lambda_.1} parent=39 // pred_fallthru
              _
          $region40: #{_lambda_.1} parent=35 // pred_fallthru
            _
          %2346 = vnop
        $region36: #{_lambda_.1} parent=27 // pred_fallthru
          _
      $region28: #{_lambda_.1} parent=5 // pred_fallthru
        _
      %p2347 = scmp.le.s32.totalorder 2, %s11
      // Predicated region
      $region71: #{_lambda_.1} parent=5 // pred_check
        %p2348 = pneg %p2347
      $region72: #{_lambda_.1} parent=5 // pred_check_branch
        %2350 = sbr.rel (%p2348) target = $region74
      $region73: #{_lambda_.1} parent=5 // pred_region
        %s2351 = ssub.s32 %s11, 2
        // Predicated region
        $region75: #{_lambda_.1} parent=73 // pred_check
          %p2352 = pneg %p108
        $region76: #{_lambda_.1} parent=73 // pred_check_branch
          %2354 = sbr.rel (%p2352) target = $region78
        $region77: #{_lambda_.1} parent=73 // pred_region
          %s2355 = sand.u32 %s93, 1
          %s2356 = sand.u32 %s93, 1
          %s2357 = smul.addr %s2356, 16
          %s2358 = scalar_lea.vmem [#allocation4], %s2357
        $region78: #{_lambda_.1} parent=73 // pred_fallthru
          _
      $region74: #{_lambda_.1} parent=5 // pred_fallthru
        _
    $region6: #{_lambda_.1} parent=1 // loop_footer
      %s15 = sadd.s32 1, %s11
    $region7: #{_lambda_.1} parent=1 // loop_footer_branch
      %10 = sbr.rel target = $region3
    $region8: #{_lambda_.1} parent=1 // loop_exit
      _
    %2359 = vsyncpa [#allocation3], 1
    %s2360 = scalar_lea.sflag [#allocation3], 1
    %2361 = vsyncpa %s2360, 1

</llo_original>
